<compile_context>
chip_gen: v7x
topology: tpu7x:2x2x1
jax: 0.10.0
libtpu: 0.0.40
codegen_flags: <defaults>
</compile_context>

<pallas_src>
import functools

import jax
import jax.numpy as jnp
from jax.experimental import pallas as pl
from jax.experimental.pallas import tpu as pltpu

_LANES = 128
_SUBLANES = 8
_MAX_BLOCK_ROWS = 8192          # (8192, 128) f32 block = 4 MiB per buffer
_MIN_PALLAS_ELEMS = 128 * 1024  # below this, plain jnp (XLA fuses it)


def _poly_envelope_f32(x, p: int):
    """Envelope polynomial + mask, all in f32.  x = r / cutoff."""
    pf = float(p)
    c_p = (pf + 1.0) * (pf + 2.0) / 2.0
    c_p1 = pf * (pf + 2.0)
    c_p2 = pf * (pf + 1.0) / 2.0
    x_p = x ** p  # integer_pow -> repeated multiplies, no exp/log path
    # Horner form of: 1 - c_p*x^p + c_p1*x^(p+1) - c_p2*x^(p+2)
    out = 1.0 + x_p * (-c_p + x * (c_p1 - c_p2 * x))
    # Mask-multiply (not jnp.where) so NaN/Inf inputs propagate exactly like
    # the PyTorch reference `out * (rscaled < 1.0).float()`.
    return out * (x < jnp.float32(1.0)).astype(jnp.float32)


def _poly_cutoff_kernel(r_ref, o_ref, *, inv_cutoff: float, p: int):
    # Elementwise hot path (VPU).  Compute in f32 regardless of the input dtype
    # (v5e has no bf16 VPU); cast back to the caller's dtype only at the store.
    x = r_ref[...].astype(jnp.float32) * jnp.float32(inv_cutoff)
    o_ref[...] = _poly_envelope_f32(x, p).astype(o_ref.dtype)


def _poly_cutoff_jnp(r: jax.Array, cutoff: float, p: int) -> jax.Array:
    """Plain-jnp path for small inputs (lets XLA fuse; no standalone launch)."""
    x = r.astype(jnp.float32) * jnp.float32(1.0 / float(cutoff))
    return _poly_envelope_f32(x, p).astype(r.dtype)


def polynomial_cutoff(r: jax.Array, cutoff: float, p: int = 6, *,
                      min_pallas_elems: int = _MIN_PALLAS_ELEMS) -> jax.Array:
    """Pallas TPU implementation of PolynomialCutoff.forward (dtype-preserving)."""
    assert p >= 2, f"Exponent p={p} has to be >= 2."

    orig_shape = r.shape
    orig_dtype = r.dtype
    n = r.size
    if n == 0:
        return r

    # Small-n fast path: a standalone pallas_call costs more in launch / DMA
    # setup than the whole op moves in HBM.
    if n < min_pallas_elems:
        return _poly_cutoff_jnp(r, cutoff, p)

    flat = r.reshape(-1)

    # Pad only to a lane multiple (<=127 elements).  The row dimension does not
    # need 8-alignment: Pallas masks the ragged last grid block.
    n_pad = -(-n // _LANES) * _LANES
    if n_pad != n:
        flat = jnp.pad(flat, (0, n_pad - n))
    rows = n_pad // _LANES
    r2d = flat.reshape(rows, _LANES)

    # Block selection: as large as reasonable (amortize per-grid-step
    # overhead), but always >= 2 grid steps when rows > 8 so the parallel grid
    # axis can shard across the two TensorCores on v7x.
    if rows <= _SUBLANES:
        block_rows = rows  # full-extent block (allowed even if not 8-aligned)
    else:
        half = -(-rows // 2)
        half = -(-half // _SUBLANES) * _SUBLANES  # round up to sublane multiple
        block_rows = min(_MAX_BLOCK_ROWS, half)
    grid = (pl.cdiv(rows, block_rows),)

    itemsize = jnp.dtype(orig_dtype).itemsize
    cost = pl.CostEstimate(
        flops=10 * n,                       # Horner + pow + mask, ~10 ops/elem
        transcendentals=0,
        bytes_accessed=2 * n * itemsize,    # one read + one write per element
    )

    kernel = functools.partial(
        _poly_cutoff_kernel, inv_cutoff=1.0 / float(cutoff), p=int(p))

    out2d = pl.pallas_call(
        kernel,
        out_shape=jax.ShapeDtypeStruct((rows, _LANES), orig_dtype),
        grid_spec=pltpu.PrefetchScalarGridSpec(
            num_scalar_prefetch=0,
            grid=grid,
            in_specs=[pl.BlockSpec((block_rows, _LANES), lambda i: (i, 0))],
            out_specs=pl.BlockSpec((block_rows, _LANES), lambda i: (i, 0)),
        ),
        compiler_params=pltpu.CompilerParams(
            # Independent blocks: shards the grid axis across both TensorCores
            # on v7x; near-neutral on v5e/v6e.
            dimension_semantics=("parallel",),
            # Up to 2 (in+out) x 2 (double-buffer) x 4 MiB = 16 MiB pipelined
            # VMEM; raise the scoped limit so v5e (16 MiB default) keeps full
            # double-buffering.  Well under every generation's physical VMEM.
            vmem_limit_bytes=32 * 1024 * 1024,
        ),
        cost_estimate=cost,
    )(r2d)

    out = out2d.reshape(-1)
    if n_pad != n:
        # TODO(synk): under jit the pad above and this slice fuse into the
        # neighbouring ops; for strict zero-overhead on unaligned giant inputs
        # fuse this op into its consumer instead of running it standalone.
        out = out[:n]
    return out.reshape(orig_shape)


def _reference(r, cutoff, p=6):
    rscaled = r.astype(jnp.float32) / cutoff
    pf = float(p)
    out = 1.0
    out = out - (pf + 1.0) * (pf + 2.0) / 2.0 * jnp.power(rscaled, pf)
    out = out + pf * (pf + 2.0) * jnp.power(rscaled, pf + 1.0)
    out = out - pf * (pf + 1.0) / 2.0 * jnp.power(rscaled, pf + 2.0)
    return out * (rscaled < 1.0).astype(jnp.float32)


if __name__ == "__main__":
    key = jax.random.PRNGKey(0)
    cutoff = 5.0

    # --- Small edge count: exercises the fused plain-jnp fast path. ---------
    E_small = 1000
    k1, k2 = jax.random.split(key)
    r_small = jax.random.uniform(k1, (E_small,), dtype=jnp.float32,
                                 minval=0.0, maxval=8.0)
    out_small = polynomial_cutoff(r_small, cutoff=cutoff, p=6)
    jax.block_until_ready(out_small)
    ref_small = _reference(r_small, cutoff, p=6)
    assert out_small.shape == r_small.shape and out_small.dtype == r_small.dtype
    assert jnp.allclose(out_small, ref_small, atol=1e-4, rtol=1e-4), \
        "mismatch vs reference (small / jnp path)"

    # --- Larger edge count (non-multiple of 128): exercises the Pallas path
    #     with lane padding, ragged last row-block and a >=2-step grid. -------
    E_big = 200_000
    r_big = jax.random.uniform(k2, (E_big,), dtype=jnp.float32,
                               minval=0.0, maxval=8.0)
    out_big = polynomial_cutoff(r_big, cutoff=cutoff, p=6)
    jax.block_until_ready(out_big)
    ref_big = _reference(r_big, cutoff, p=6)
    assert out_big.shape == r_big.shape and out_big.dtype == r_big.dtype
    assert jnp.allclose(out_big, ref_big, atol=1e-4, rtol=1e-4), \
        "mismatch vs reference (large / pallas path, f32)"

    # dtype preservation on the Pallas path: bf16 in -> bf16 out (f32 compute).
    r_bf16 = r_big.astype(jnp.bfloat16)
    out_bf16 = polynomial_cutoff(r_bf16, cutoff=cutoff, p=6)
    jax.block_until_ready(out_bf16)
    assert out_bf16.shape == r_bf16.shape and out_bf16.dtype == jnp.bfloat16
    ref_bf16 = _reference(r_bf16, cutoff, p=6)
    assert jnp.allclose(out_bf16.astype(jnp.float32), ref_bf16,
                        atol=3e-2, rtol=3e-2), \
        "mismatch vs reference (large / pallas path, bf16)"

    print("KERNEL_OK")
</pallas_src>

<mosaic_0001>
module attributes {stable_mosaic.version = 11 : i64} {
  func.func @_poly_cutoff_kernel(%arg0: i32, %arg1: memref<784x128xf32, #tpu.memory_space<vmem>>, %arg2: memref<784x128xf32, #tpu.memory_space<vmem>>) attributes {dimension_semantics = [#tpu.dimension_semantics<parallel>], iteration_bounds = array<i64: 2>, scalar_prefetch = 0 : i64, scratch_operands = 0 : i64, tpu.core_type = #tpu.core_type<tc>, window_params = [{transform_indices = @transform_0, window_bounds = array<i64: 784, 128>}, {transform_indices = @transform_1, window_bounds = array<i64: 784, 128>}]} {
    %c0 = arith.constant 0 : index
    %c0_0 = arith.constant 0 : index
    %0 = vector.load %arg1[%c0, %c0_0] : memref<784x128xf32, #tpu.memory_space<vmem>>, vector<784x128xf32>
    %cst = arith.constant 2.000000e-01 : f32
    %1 = vector.broadcast %cst : f32 to vector<784x128xf32>
    %2 = arith.mulf %0, %1 : vector<784x128xf32>
    %3 = arith.mulf %2, %2 : vector<784x128xf32>
    %4 = arith.mulf %3, %3 : vector<784x128xf32>
    %5 = arith.mulf %3, %4 : vector<784x128xf32>
    %cst_1 = arith.constant 2.100000e+01 : f32
    %6 = vector.broadcast %cst_1 : f32 to vector<784x128xf32>
    %7 = arith.mulf %6, %2 : vector<784x128xf32>
    %cst_2 = arith.constant 4.800000e+01 : f32
    %8 = vector.broadcast %cst_2 : f32 to vector<784x128xf32>
    %9 = arith.subf %8, %7 : vector<784x128xf32>
    %10 = arith.mulf %2, %9 : vector<784x128xf32>
    %cst_3 = arith.constant -2.800000e+01 : f32
    %11 = vector.broadcast %cst_3 : f32 to vector<784x128xf32>
    %12 = arith.addf %11, %10 : vector<784x128xf32>
    %13 = arith.mulf %5, %12 : vector<784x128xf32>
    %cst_4 = arith.constant 1.000000e+00 : f32
    %14 = vector.broadcast %cst_4 : f32 to vector<784x128xf32>
    %15 = arith.addf %14, %13 : vector<784x128xf32>
    %cst_5 = arith.constant 1.000000e+00 : f32
    %16 = vector.broadcast %cst_5 : f32 to vector<784x128xf32>
    %17 = arith.cmpf olt, %2, %16 : vector<784x128xf32>
    %18 = arith.extui %17 : vector<784x128xi1> to vector<784x128xi32>
    %19 = arith.sitofp %18 : vector<784x128xi32> to vector<784x128xf32>
    %20 = arith.mulf %15, %19 : vector<784x128xf32>
    %c0_6 = arith.constant 0 : index
    %c0_7 = arith.constant 0 : index
    %21 = vector.load %arg2[%c0_6, %c0_7] : memref<784x128xf32, #tpu.memory_space<vmem>>, vector<784x128xf32>
    tpu.vector_store %arg2[%c0_6, %c0_7], %20 {strides = array<i32>} : memref<784x128xf32, #tpu.memory_space<vmem>>, vector<784x128xf32>,
    return
  }
  func.func @transform_0(%arg0: i32) -> (i32, i32) {
    %c0_i32 = arith.constant 0 : i32
    %c0_i32_0 = arith.constant 0 : i32
    return %arg0, %c0_i32 : i32, i32
  }
  func.func @transform_1(%arg0: i32) -> (i32, i32) {
    %c0_i32 = arith.constant 0 : i32
    %c0_i32_0 = arith.constant 0 : i32
    return %arg0, %c0_i32 : i32, i32
  }
}

</mosaic_0001>

<llo_original>
// kernel: tpu_custom_call.1
$region0: #{tpu_custom_call.1}
  #allocation0 [shape = 'u32[]', space=smem, size = 0x4, offset = 0x4, fixed_abs, tag = 'smem constant byte address 0x4 - core index']
  #allocation1 [shape = 'u32[144,128]{1,0:T(1,128)}', space=vmem, size = 0x12000, scoped, tag = 'internal scratch']
  %s0 = inlined_call_operand.hbm [shape: f32[1563,128], index: 0, kind: input, shape index: {}]
  %s1 = inlined_call_operand.hbm [shape: f32[1563,128], index: 1, kind: output, shape index: {}]
  %s2 = sld [smem:[#allocation0]]
  $region41: #{tpu_custom_call.1} parent=0
    _
  %s4 = ssub.s32 1, %s2
  %s5 = scalar_select 0, %s4, %s2
  $region1: #{tpu_custom_call.1} parent=0
    #allocation2 [shape = 'u8[802816]{0}', space=vmem, size = 0xc4000, scoped, tag = 'input window, operand 0']
    #allocation3 [shape = 's32[2]{0}', space=sflag, size = 0x8, scoped, tag = 'scoped memory for tpu_custom_call.1']
    #allocation4 [shape = 's32[2]{0}', space=sflag, size = 0x8, scoped, tag = 'scoped memory for tpu_custom_call.1']
    #allocation5 [shape = 'u8[802816]{0}', space=vmem, size = 0xc4000, scoped, tag = 'output window, operand 0']
    %6 = vsyncpa [#allocation3], 0
    %s7 = scalar_lea.sflag [#allocation3], 1
    %8 = vsyncpa %s7, 0
    %9 = vsyncpa [#allocation4], 0
    %s10 = scalar_lea.sflag [#allocation4], 1
    %11 = vsyncpa %s10, 0
    loop: start=0, step=1, limit=4
    $region2: #{tpu_custom_call.1} parent=1 // loop_pre_header
      _
    $region3: #{tpu_custom_call.1} parent=1 // loop_header
      %s13 = sphi 0, %s17
      %p14 = scmp.ge.s32.totalorder %s13, 4
      %s23 = sphi 0, %s25
      %s26 = sphi 0, %s23
      %s27 = sphi 0, %s26
      %s43 = sphi 0, %s27
      %s49 = sphi 0, %s51
      %s52 = sphi 0, %s49
      %s53 = sphi 0, %s52
      %s69 = sphi 0, %s53
    $region4: #{tpu_custom_call.1} parent=1 // loop_header_branch
      %16 = sbr.rel (%p14) target = $region8
    $region5: #{tpu_custom_call.1} parent=1 // loop_body
      %s18 = ssub.s32 %s13, 1
      %s19 = ssub.s32 %s13, 2
      %s20 = sadd.s32 %s13, 1
      %s21 = ssub.s32 %s13, %s20
      %p22 = scmp.eq.s32.totalorder %s21, 0
      %s24 = sadd.s32 %s23, 1
      %s25 = scalar_select %p22, %s23, %s24
      %p28 = pneg %p22
      %p29 = scmp.eq.s32.totalorder %s13, 1
      %p30 = por %p28, %p29
      %p31 = scmp.ne.s32.totalorder %s23, %s26
      %p32 = scmp.eq.s32.totalorder %s13, 0
      %p33 = por %p31, %p32
      %p34 = scmp.ne.s32.totalorder %s23, %s26
      %p35 = scmp.eq.s32.totalorder %s18, 1
      %p36 = por %p34, %p35
      %p37 = scmp.ne.s32.totalorder %s26, %s27
      %p38 = scmp.eq.s32.totalorder %s18, 0
      %p39 = por %p37, %p38
      %p40 = scmp.ne.s32.totalorder %s26, %s27
      %p41 = scmp.eq.s32.totalorder %s19, 1
      %p42 = por %p40, %p41
      %p44 = scmp.ne.s32.totalorder %s27, %s43
      %p45 = scmp.eq.s32.totalorder %s19, 0
      %p46 = por %p44, %p45
      %s47 = ssub.s32 %s13, %s20
      %p48 = scmp.eq.s32.totalorder %s47, 0
      %s50 = sadd.s32 %s49, 1
      %s51 = scalar_select %p48, %s49, %s50
      %p54 = pneg %p48
      %p55 = scmp.eq.s32.totalorder %s13, 1
      %p56 = por %p54, %p55
      %p57 = scmp.ne.s32.totalorder %s49, %s52
      %p58 = scmp.eq.s32.totalorder %s13, 0
      %p59 = por %p57, %p58
      %p60 = scmp.ne.s32.totalorder %s49, %s52
      %p61 = scmp.eq.s32.totalorder %s18, 1
      %p62 = por %p60, %p61
      %p63 = scmp.ne.s32.totalorder %s52, %s53
      %p64 = scmp.eq.s32.totalorder %s18, 0
      %p65 = por %p63, %p64
      %p66 = scmp.ne.s32.totalorder %s52, %s53
      %p67 = scmp.eq.s32.totalorder %s19, 1
      %p68 = por %p66, %p67
      %p70 = scmp.ne.s32.totalorder %s53, %s69
      %p71 = scmp.eq.s32.totalorder %s19, 0
      %p72 = por %p70, %p71
      %p73 = scmp.le.s32.totalorder 1, %s13
      %p74 = scmp.lt.s32.totalorder %s13, 3
      %p75 = pnand %p73, %p74
      %p76 = pneg %p75
      // Predicated region
      $region9: #{tpu_custom_call.1} parent=5 // pred_check
        _
      $region10: #{tpu_custom_call.1} parent=5 // pred_check_branch
        %78 = sbr.rel (%p75) target = $region12
      $region11: #{tpu_custom_call.1} parent=5 // pred_region
        %s79 = ssub.s32 %s13, 1
      $region12: #{tpu_custom_call.1} parent=5 // pred_fallthru
        _
      %p80 = scmp.lt.s32.totalorder %s13, 2
      // Predicated region
      $region13: #{tpu_custom_call.1} parent=5 // pred_check
        %p81 = pneg %p80
      $region14: #{tpu_custom_call.1} parent=5 // pred_check_branch
        %83 = sbr.rel (%p81) target = $region16
      $region15: #{tpu_custom_call.1} parent=5 // pred_region
        // Predicated region
        $region17: #{tpu_custom_call.1} parent=15 // pred_check
          %p84 = pneg %p33
        $region18: #{tpu_custom_call.1} parent=15 // pred_check_branch
          %86 = sbr.rel (%p84) target = $region20
        $region19: #{tpu_custom_call.1} parent=15 // pred_region
          %s87 = sand.u32 %s23, 1
          %s88 = scalar_lea.sflag [#allocation3], %s87
          %s89 = sand.u32 %s23, 1
          %s90 = smul.addr %s89, 784
          %s91 = scalar_lea.vmem [#allocation2], %s90
          %s92 = smul.u32 98, %s13
          %s94 = ssub.s32 12544, 12544
          %95 = vsyncadd %s88, %s94
          %s96 = smul.addr %s92, 128
          %s97 = scalar_lea.hbm %s0, %s96
          %s98 = sshll.u32 %s91, 4
          %s99 = int_to_ptr.vmem [resolvable:$true] %s98
          %104 = dma.hbm_to_vmem [thread:$0]  %s97, 12544, %s99, %s88, 128, 128, 8
        $region20: #{tpu_custom_call.1} parent=15 // pred_fallthru
          _
      $region16: #{tpu_custom_call.1} parent=5 // pred_fallthru
        _
      %p105 = scmp.le.s32.totalorder 1, %s13
      %p106 = scmp.lt.s32.totalorder %s13, 3
      %p107 = pnand %p105, %p106
      %p108 = pneg %p107
      // Predicated region
      $region21: #{tpu_custom_call.1} parent=5 // pred_check
        _
      $region22: #{tpu_custom_call.1} parent=5 // pred_check_branch
        %110 = sbr.rel (%p107) target = $region24
      $region23: #{tpu_custom_call.1} parent=5 // pred_region
        %s111 = ssub.s32 %s13, 1
        %s112 = sand.u32 %s26, 1
        %s113 = scalar_lea.sflag [#allocation3], %s112
        %s114 = sand.u32 %s26, 1
        %s115 = smul.addr %s114, 784
        %s116 = scalar_lea.vmem [#allocation2], %s115
        // Predicated region
        $region25: #{tpu_custom_call.1} parent=23 // pred_check
          %p117 = pneg %p39
        $region26: #{tpu_custom_call.1} parent=23 // pred_check_branch
          %119 = sbr.rel (%p117) target = $region28
        $region27: #{tpu_custom_call.1} parent=23 // pred_region
          %120 = dma.done %s113, 12544
        $region28: #{tpu_custom_call.1} parent=23 // pred_fallthru
          _
        %s121 = sand.u32 %s26, 1
        %s122 = scalar_lea.sflag [#allocation3], %s121
        %s123 = sand.u32 %s26, 1
        %s124 = smul.addr %s123, 784
        %s125 = scalar_lea.vmem [#allocation2], %s124
        %p126 = pneg %p39
        %p127 = pneg %p36
        %p128 = pneg %p65
        %p129 = pneg %p62
        %s130 = sand.u32 %s52, 1
        %s131 = scalar_lea.sflag [#allocation4], %s130
        %s132 = sand.u32 %s52, 1
        %s133 = smul.addr %s132, 784
        %s134 = scalar_lea.vmem [#allocation5], %s133
        %s135 = smul.u32 98, %s18
        %s136 = smul.u32 98, %s18
        %v137 = vld [vmem:[%s116] sm:$0xff]
        %v138 = vld [vmem:[%s116 + $0x8] sm:$0xff]
        %v139 = vld [vmem:[%s116 + $0x10] sm:$0xff]
        %v140 = vld [vmem:[%s116 + $0x18] sm:$0xff]
        %v141 = vld [vmem:[%s116 + $0x20] sm:$0xff]
        %v142 = vld [vmem:[%s116 + $0x28] sm:$0xff]
        %v143 = vld [vmem:[%s116 + $0x30] sm:$0xff]
        %v144 = vld [vmem:[%s116 + $0x38] sm:$0xff]
        %v145 = vld [vmem:[%s116 + $0x40] sm:$0xff]
        %v146 = vld [vmem:[%s116 + $0x48] sm:$0xff]
        %v147 = vld [vmem:[%s116 + $0x50] sm:$0xff]
        %v148 = vld [vmem:[%s116 + $0x58] sm:$0xff]
        %v149 = vld [vmem:[%s116 + $0x60] sm:$0xff]
        %v150 = vld [vmem:[%s116 + $0x68] sm:$0xff]
        %v151 = vld [vmem:[%s116 + $0x70] sm:$0xff]
        %v152 = vld [vmem:[%s116 + $0x78] sm:$0xff]
        %v153 = vld [vmem:[%s116 + $0x80] sm:$0xff]
        %v154 = vld [vmem:[%s116 + $0x88] sm:$0xff]
        %v155 = vld [vmem:[%s116 + $0x90] sm:$0xff]
        %v156 = vld [vmem:[%s116 + $0x98] sm:$0xff]
        %v157 = vld [vmem:[%s116 + $0xa0] sm:$0xff]
        %v158 = vld [vmem:[%s116 + $0xa8] sm:$0xff]
        %v159 = vld [vmem:[%s116 + $0xb0] sm:$0xff]
        %v160 = vld [vmem:[%s116 + $0xb8] sm:$0xff]
        %v161 = vld [vmem:[%s116 + $0xc0] sm:$0xff]
        %v162 = vld [vmem:[%s116 + $0xc8] sm:$0xff]
        %v163 = vld [vmem:[%s116 + $0xd0] sm:$0xff]
        %v164 = vld [vmem:[%s116 + $0xd8] sm:$0xff]
        %v165 = vld [vmem:[%s116 + $0xe0] sm:$0xff]
        %v166 = vld [vmem:[%s116 + $0xe8] sm:$0xff]
        %v167 = vld [vmem:[%s116 + $0xf0] sm:$0xff]
        %v168 = vld [vmem:[%s116 + $0xf8] sm:$0xff]
        %v169 = vld [vmem:[%s116 + $0x100] sm:$0xff]
        %v170 = vld [vmem:[%s116 + $0x108] sm:$0xff]
        %v171 = vld [vmem:[%s116 + $0x110] sm:$0xff]
        %v172 = vld [vmem:[%s116 + $0x118] sm:$0xff]
        %v173 = vld [vmem:[%s116 + $0x120] sm:$0xff]
        %v174 = vld [vmem:[%s116 + $0x128] sm:$0xff]
        %v175 = vld [vmem:[%s116 + $0x130] sm:$0xff]
        %v176 = vld [vmem:[%s116 + $0x138] sm:$0xff]
        %v177 = vld [vmem:[%s116 + $0x140] sm:$0xff]
        %v178 = vld [vmem:[%s116 + $0x148] sm:$0xff]
        %v179 = vld [vmem:[%s116 + $0x150] sm:$0xff]
        %v180 = vld [vmem:[%s116 + $0x158] sm:$0xff]
        %v181 = vld [vmem:[%s116 + $0x160] sm:$0xff]
        %v182 = vld [vmem:[%s116 + $0x168] sm:$0xff]
        %v183 = vld [vmem:[%s116 + $0x170] sm:$0xff]
        %v184 = vld [vmem:[%s116 + $0x178] sm:$0xff]
        %v185 = vld [vmem:[%s116 + $0x180] sm:$0xff]
        %v186 = vld [vmem:[%s116 + $0x188] sm:$0xff]
        %v187 = vld [vmem:[%s116 + $0x190] sm:$0xff]
        %v188 = vld [vmem:[%s116 + $0x198] sm:$0xff]
        %v189 = vld [vmem:[%s116 + $0x1a0] sm:$0xff]
        %v190 = vld [vmem:[%s116 + $0x1a8] sm:$0xff]
        %v191 = vld [vmem:[%s116 + $0x1b0] sm:$0xff]
        %v192 = vld [vmem:[%s116 + $0x1b8] sm:$0xff]
        %v193 = vld [vmem:[%s116 + $0x1c0] sm:$0xff]
        %v194 = vld [vmem:[%s116 + $0x1c8] sm:$0xff]
        %v195 = vld [vmem:[%s116 + $0x1d0] sm:$0xff]
        %v196 = vld [vmem:[%s116 + $0x1d8] sm:$0xff]
        %v197 = vld [vmem:[%s116 + $0x1e0] sm:$0xff]
        %v198 = vld [vmem:[%s116 + $0x1e8] sm:$0xff]
        %v199 = vld [vmem:[%s116 + $0x1f0] sm:$0xff]
        %v200 = vld [vmem:[%s116 + $0x1f8] sm:$0xff]
        %v201 = vld [vmem:[%s116 + $0x200] sm:$0xff]
        %v202 = vld [vmem:[%s116 + $0x208] sm:$0xff]
        %v203 = vld [vmem:[%s116 + $0x210] sm:$0xff]
        %v204 = vld [vmem:[%s116 + $0x218] sm:$0xff]
        %v205 = vld [vmem:[%s116 + $0x220] sm:$0xff]
        %v206 = vld [vmem:[%s116 + $0x228] sm:$0xff]
        %v207 = vld [vmem:[%s116 + $0x230] sm:$0xff]
        %v208 = vld [vmem:[%s116 + $0x238] sm:$0xff]
        %v209 = vld [vmem:[%s116 + $0x240] sm:$0xff]
        %v210 = vld [vmem:[%s116 + $0x248] sm:$0xff]
        %v211 = vld [vmem:[%s116 + $0x250] sm:$0xff]
        %v212 = vld [vmem:[%s116 + $0x258] sm:$0xff]
        %v213 = vld [vmem:[%s116 + $0x260] sm:$0xff]
        %v214 = vld [vmem:[%s116 + $0x268] sm:$0xff]
        %v215 = vld [vmem:[%s116 + $0x270] sm:$0xff]
        %v216 = vld [vmem:[%s116 + $0x278] sm:$0xff]
        %v217 = vld [vmem:[%s116 + $0x280] sm:$0xff]
        %v218 = vld [vmem:[%s116 + $0x288] sm:$0xff]
        %v219 = vld [vmem:[%s116 + $0x290] sm:$0xff]
        %v220 = vld [vmem:[%s116 + $0x298] sm:$0xff]
        %v221 = vld [vmem:[%s116 + $0x2a0] sm:$0xff]
        %v222 = vld [vmem:[%s116 + $0x2a8] sm:$0xff]
        %v223 = vld [vmem:[%s116 + $0x2b0] sm:$0xff]
        %v224 = vld [vmem:[%s116 + $0x2b8] sm:$0xff]
        %v225 = vld [vmem:[%s116 + $0x2c0] sm:$0xff]
        %v226 = vld [vmem:[%s116 + $0x2c8] sm:$0xff]
        %v227 = vld [vmem:[%s116 + $0x2d0] sm:$0xff]
        %v228 = vld [vmem:[%s116 + $0x2d8] sm:$0xff]
        %v229 = vld [vmem:[%s116 + $0x2e0] sm:$0xff]
        %v230 = vld [vmem:[%s116 + $0x2e8] sm:$0xff]
        %v231 = vld [vmem:[%s116 + $0x2f0] sm:$0xff]
        %v232 = vld [vmem:[%s116 + $0x2f8] sm:$0xff]
        %v233 = vld [vmem:[%s116 + $0x300] sm:$0xff]
        %v234 = vld [vmem:[%s116 + $0x308] sm:$0xff]
        %v235 = vmul.f32 %v137, 0.2
        %v236 = vmul.f32 %v138, 0.2
        %v237 = vmul.f32 %v139, 0.2
        %v238 = vmul.f32 %v140, 0.2
        %v239 = vmul.f32 %v141, 0.2
        %v240 = vmul.f32 %v142, 0.2
        %v241 = vmul.f32 %v143, 0.2
        %v242 = vmul.f32 %v144, 0.2
        %v243 = vmul.f32 %v145, 0.2
        %v244 = vmul.f32 %v146, 0.2
        %v245 = vmul.f32 %v147, 0.2
        %v246 = vmul.f32 %v148, 0.2
        %v247 = vmul.f32 %v149, 0.2
        %v248 = vmul.f32 %v150, 0.2
        %v249 = vmul.f32 %v151, 0.2
        %v250 = vmul.f32 %v152, 0.2
        %v251 = vmul.f32 %v153, 0.2
        %v252 = vmul.f32 %v154, 0.2
        %v253 = vmul.f32 %v155, 0.2
        %v254 = vmul.f32 %v156, 0.2
        %v255 = vmul.f32 %v157, 0.2
        %v256 = vmul.f32 %v158, 0.2
        %v257 = vmul.f32 %v159, 0.2
        %v258 = vmul.f32 %v160, 0.2
        %v259 = vmul.f32 %v161, 0.2
        %v260 = vmul.f32 %v162, 0.2
        %v261 = vmul.f32 %v163, 0.2
        %v262 = vmul.f32 %v164, 0.2
        %v263 = vmul.f32 %v165, 0.2
        %v264 = vmul.f32 %v166, 0.2
        %v265 = vmul.f32 %v167, 0.2
        %v266 = vmul.f32 %v168, 0.2
        %v267 = vmul.f32 %v169, 0.2
        %v268 = vmul.f32 %v170, 0.2
        %v269 = vmul.f32 %v171, 0.2
        %v270 = vmul.f32 %v172, 0.2
        %v271 = vmul.f32 %v173, 0.2
        %v272 = vmul.f32 %v174, 0.2
        %v273 = vmul.f32 %v175, 0.2
        %v274 = vmul.f32 %v176, 0.2
        %v275 = vmul.f32 %v177, 0.2
        %v276 = vmul.f32 %v178, 0.2
        %v277 = vmul.f32 %v179, 0.2
        %v278 = vmul.f32 %v180, 0.2
        %v279 = vmul.f32 %v181, 0.2
        %v280 = vmul.f32 %v182, 0.2
        %v281 = vmul.f32 %v183, 0.2
        %v282 = vmul.f32 %v184, 0.2
        %v283 = vmul.f32 %v185, 0.2
        %v284 = vmul.f32 %v186, 0.2
        %v285 = vmul.f32 %v187, 0.2
        %v286 = vmul.f32 %v188, 0.2
        %v287 = vmul.f32 %v189, 0.2
        %v288 = vmul.f32 %v190, 0.2
        %v289 = vmul.f32 %v191, 0.2
        %v290 = vmul.f32 %v192, 0.2
        %v291 = vmul.f32 %v193, 0.2
        %v292 = vmul.f32 %v194, 0.2
        %v293 = vmul.f32 %v195, 0.2
        %v294 = vmul.f32 %v196, 0.2
        %v295 = vmul.f32 %v197, 0.2
        %v296 = vmul.f32 %v198, 0.2
        %v297 = vmul.f32 %v199, 0.2
        %v298 = vmul.f32 %v200, 0.2
        %v299 = vmul.f32 %v201, 0.2
        %v300 = vmul.f32 %v202, 0.2
        %v301 = vmul.f32 %v203, 0.2
        %v302 = vmul.f32 %v204, 0.2
        %v303 = vmul.f32 %v205, 0.2
        %v304 = vmul.f32 %v206, 0.2
        %v305 = vmul.f32 %v207, 0.2
        %v306 = vmul.f32 %v208, 0.2
        %v307 = vmul.f32 %v209, 0.2
        %v308 = vmul.f32 %v210, 0.2
        %v309 = vmul.f32 %v211, 0.2
        %v310 = vmul.f32 %v212, 0.2
        %v311 = vmul.f32 %v213, 0.2
        %v312 = vmul.f32 %v214, 0.2
        %v313 = vmul.f32 %v215, 0.2
        %v314 = vmul.f32 %v216, 0.2
        %v315 = vmul.f32 %v217, 0.2
        %v316 = vmul.f32 %v218, 0.2
        %v317 = vmul.f32 %v219, 0.2
        %v318 = vmul.f32 %v220, 0.2
        %v319 = vmul.f32 %v221, 0.2
        %v320 = vmul.f32 %v222, 0.2
        %v321 = vmul.f32 %v223, 0.2
        %v322 = vmul.f32 %v224, 0.2
        %v323 = vmul.f32 %v225, 0.2
        %v324 = vmul.f32 %v226, 0.2
        %v325 = vmul.f32 %v227, 0.2
        %v326 = vmul.f32 %v228, 0.2
        %v327 = vmul.f32 %v229, 0.2
        %v328 = vmul.f32 %v230, 0.2
        %v329 = vmul.f32 %v231, 0.2
        %v330 = vmul.f32 %v232, 0.2
        %v331 = vmul.f32 %v233, 0.2
        %v332 = vmul.f32 %v234, 0.2
        %v333 = vmul.f32 %v235, %v235
        %v334 = vmul.f32 %v236, %v236
        %v335 = vmul.f32 %v237, %v237
        %v336 = vmul.f32 %v238, %v238
        %v337 = vmul.f32 %v239, %v239
        %v338 = vmul.f32 %v240, %v240
        %v339 = vmul.f32 %v241, %v241
        %v340 = vmul.f32 %v242, %v242
        %v341 = vmul.f32 %v243, %v243
        %v342 = vmul.f32 %v244, %v244
        %v343 = vmul.f32 %v245, %v245
        %v344 = vmul.f32 %v246, %v246
        %v345 = vmul.f32 %v247, %v247
        %v346 = vmul.f32 %v248, %v248
        %v347 = vmul.f32 %v249, %v249
        %v348 = vmul.f32 %v250, %v250
        %v349 = vmul.f32 %v251, %v251
        %v350 = vmul.f32 %v252, %v252
        %v351 = vmul.f32 %v253, %v253
        %v352 = vmul.f32 %v254, %v254
        %v353 = vmul.f32 %v255, %v255
        %v354 = vmul.f32 %v256, %v256
        %v355 = vmul.f32 %v257, %v257
        %v356 = vmul.f32 %v258, %v258
        %v357 = vmul.f32 %v259, %v259
        %v358 = vmul.f32 %v260, %v260
        %v359 = vmul.f32 %v261, %v261
        %v360 = vmul.f32 %v262, %v262
        %v361 = vmul.f32 %v263, %v263
        %v362 = vmul.f32 %v264, %v264
        %v363 = vmul.f32 %v265, %v265
        %v364 = vmul.f32 %v266, %v266
        %v365 = vmul.f32 %v267, %v267
        %v366 = vmul.f32 %v268, %v268
        %v367 = vmul.f32 %v269, %v269
        %v368 = vmul.f32 %v270, %v270
        %v369 = vmul.f32 %v271, %v271
        %v370 = vmul.f32 %v272, %v272
        %v371 = vmul.f32 %v273, %v273
        %v372 = vmul.f32 %v274, %v274
        %v373 = vmul.f32 %v275, %v275
        %v374 = vmul.f32 %v276, %v276
        %v375 = vmul.f32 %v277, %v277
        %v376 = vmul.f32 %v278, %v278
        %v377 = vmul.f32 %v279, %v279
        %v378 = vmul.f32 %v280, %v280
        %v379 = vmul.f32 %v281, %v281
        %v380 = vmul.f32 %v282, %v282
        %v381 = vmul.f32 %v283, %v283
        %v382 = vmul.f32 %v284, %v284
        %v383 = vmul.f32 %v285, %v285
        %v384 = vmul.f32 %v286, %v286
        %v385 = vmul.f32 %v287, %v287
        %v386 = vmul.f32 %v288, %v288
        %v387 = vmul.f32 %v289, %v289
        %v388 = vmul.f32 %v290, %v290
        %v389 = vmul.f32 %v291, %v291
        %v390 = vmul.f32 %v292, %v292
        %v391 = vmul.f32 %v293, %v293
        %v392 = vmul.f32 %v294, %v294
        %v393 = vmul.f32 %v295, %v295
        %v394 = vmul.f32 %v296, %v296
        %v395 = vmul.f32 %v297, %v297
        %v396 = vmul.f32 %v298, %v298
        %v397 = vmul.f32 %v299, %v299
        %v398 = vmul.f32 %v300, %v300
        %v399 = vmul.f32 %v301, %v301
        %v400 = vmul.f32 %v302, %v302
        %v401 = vmul.f32 %v303, %v303
        %v402 = vmul.f32 %v304, %v304
        %v403 = vmul.f32 %v305, %v305
        %v404 = vmul.f32 %v306, %v306
        %v405 = vmul.f32 %v307, %v307
        %v406 = vmul.f32 %v308, %v308
        %v407 = vmul.f32 %v309, %v309
        %v408 = vmul.f32 %v310, %v310
        %v409 = vmul.f32 %v311, %v311
        %v410 = vmul.f32 %v312, %v312
        %v411 = vmul.f32 %v313, %v313
        %v412 = vmul.f32 %v314, %v314
        %v413 = vmul.f32 %v315, %v315
        %v414 = vmul.f32 %v316, %v316
        %v415 = vmul.f32 %v317, %v317
        %v416 = vmul.f32 %v318, %v318
        %v417 = vmul.f32 %v319, %v319
        %v418 = vmul.f32 %v320, %v320
        %v419 = vmul.f32 %v321, %v321
        %v420 = vmul.f32 %v322, %v322
        %v421 = vmul.f32 %v323, %v323
        %v422 = vmul.f32 %v324, %v324
        %v423 = vmul.f32 %v325, %v325
        %v424 = vmul.f32 %v326, %v326
        %v425 = vmul.f32 %v327, %v327
        %v426 = vmul.f32 %v328, %v328
        %v427 = vmul.f32 %v329, %v329
        %v428 = vmul.f32 %v330, %v330
        %v429 = vmul.f32 %v331, %v331
        %v430 = vmul.f32 %v332, %v332
        %v431 = vmul.f32 %v333, %v333
        %v432 = vmul.f32 %v334, %v334
        %v433 = vmul.f32 %v335, %v335
        %v434 = vmul.f32 %v336, %v336
        %v435 = vmul.f32 %v337, %v337
        %v436 = vmul.f32 %v338, %v338
        %v437 = vmul.f32 %v339, %v339
        %v438 = vmul.f32 %v340, %v340
        %v439 = vmul.f32 %v341, %v341
        %v440 = vmul.f32 %v342, %v342
        %v441 = vmul.f32 %v343, %v343
        %v442 = vmul.f32 %v344, %v344
        %v443 = vmul.f32 %v345, %v345
        %v444 = vmul.f32 %v346, %v346
        %v445 = vmul.f32 %v347, %v347
        %v446 = vmul.f32 %v348, %v348
        %v447 = vmul.f32 %v349, %v349
        %v448 = vmul.f32 %v350, %v350
        %v449 = vmul.f32 %v351, %v351
        %v450 = vmul.f32 %v352, %v352
        %v451 = vmul.f32 %v353, %v353
        %v452 = vmul.f32 %v354, %v354
        %v453 = vmul.f32 %v355, %v355
        %v454 = vmul.f32 %v356, %v356
        %v455 = vmul.f32 %v357, %v357
        %v456 = vmul.f32 %v358, %v358
        %v457 = vmul.f32 %v359, %v359
        %v458 = vmul.f32 %v360, %v360
        %v459 = vmul.f32 %v361, %v361
        %v460 = vmul.f32 %v362, %v362
        %v461 = vmul.f32 %v363, %v363
        %v462 = vmul.f32 %v364, %v364
        %v463 = vmul.f32 %v365, %v365
        %v464 = vmul.f32 %v366, %v366
        %v465 = vmul.f32 %v367, %v367
        %v466 = vmul.f32 %v368, %v368
        %v467 = vmul.f32 %v369, %v369
        %v468 = vmul.f32 %v370, %v370
        %v469 = vmul.f32 %v371, %v371
        %v470 = vmul.f32 %v372, %v372
        %v471 = vmul.f32 %v373, %v373
        %v472 = vmul.f32 %v374, %v374
        %v473 = vmul.f32 %v375, %v375
        %v474 = vmul.f32 %v376, %v376
        %v475 = vmul.f32 %v377, %v377
        %v476 = vmul.f32 %v378, %v378
        %v477 = vmul.f32 %v379, %v379
        %v478 = vmul.f32 %v380, %v380
        %v479 = vmul.f32 %v381, %v381
        %v480 = vmul.f32 %v382, %v382
        %v481 = vmul.f32 %v383, %v383
        %v482 = vmul.f32 %v384, %v384
        %v483 = vmul.f32 %v385, %v385
        %v484 = vmul.f32 %v386, %v386
        %v485 = vmul.f32 %v387, %v387
        %v486 = vmul.f32 %v388, %v388
        %v487 = vmul.f32 %v389, %v389
        %v488 = vmul.f32 %v390, %v390
        %v489 = vmul.f32 %v391, %v391
        %v490 = vmul.f32 %v392, %v392
        %v491 = vmul.f32 %v393, %v393
        %v492 = vmul.f32 %v394, %v394
        %v493 = vmul.f32 %v395, %v395
        %v494 = vmul.f32 %v396, %v396
        %v495 = vmul.f32 %v397, %v397
        %v496 = vmul.f32 %v398, %v398
        %v497 = vmul.f32 %v399, %v399
        %v498 = vmul.f32 %v400, %v400
        %v499 = vmul.f32 %v401, %v401
        %v500 = vmul.f32 %v402, %v402
        %v501 = vmul.f32 %v403, %v403
        %v502 = vmul.f32 %v404, %v404
        %v503 = vmul.f32 %v405, %v405
        %v504 = vmul.f32 %v406, %v406
        %v505 = vmul.f32 %v407, %v407
        %v506 = vmul.f32 %v408, %v408
        %v507 = vmul.f32 %v409, %v409
        %v508 = vmul.f32 %v410, %v410
        %v509 = vmul.f32 %v411, %v411
        %v510 = vmul.f32 %v412, %v412
        %v511 = vmul.f32 %v413, %v413
        %v512 = vmul.f32 %v414, %v414
        %v513 = vmul.f32 %v415, %v415
        %v514 = vmul.f32 %v416, %v416
        %v515 = vmul.f32 %v417, %v417
        %v516 = vmul.f32 %v418, %v418
        %v517 = vmul.f32 %v419, %v419
        %v518 = vmul.f32 %v420, %v420
        %v519 = vmul.f32 %v421, %v421
        %v520 = vmul.f32 %v422, %v422
        %v521 = vmul.f32 %v423, %v423
        %v522 = vmul.f32 %v424, %v424
        %v523 = vmul.f32 %v425, %v425
        %v524 = vmul.f32 %v426, %v426
        %v525 = vmul.f32 %v427, %v427
        %v526 = vmul.f32 %v428, %v428
        %v527 = vmul.f32 %v429, %v429
        %v528 = vmul.f32 %v430, %v430
        %v529 = vmul.f32 %v333, %v431
        %v530 = vmul.f32 %v334, %v432
        %v531 = vmul.f32 %v335, %v433
        %v532 = vmul.f32 %v336, %v434
        %v533 = vmul.f32 %v337, %v435
        %v534 = vmul.f32 %v338, %v436
        %v535 = vmul.f32 %v339, %v437
        %v536 = vmul.f32 %v340, %v438
        %v537 = vmul.f32 %v341, %v439
        %v538 = vmul.f32 %v342, %v440
        %v539 = vmul.f32 %v343, %v441
        %v540 = vmul.f32 %v344, %v442
        %v541 = vmul.f32 %v345, %v443
        %v542 = vmul.f32 %v346, %v444
        %v543 = vmul.f32 %v347, %v445
        %v544 = vmul.f32 %v348, %v446
        %v545 = vmul.f32 %v349, %v447
        %v546 = vmul.f32 %v350, %v448
        %v547 = vmul.f32 %v351, %v449
        %v548 = vmul.f32 %v352, %v450
        %v549 = vmul.f32 %v353, %v451
        %v550 = vmul.f32 %v354, %v452
        %v551 = vmul.f32 %v355, %v453
        %v552 = vmul.f32 %v356, %v454
        %v553 = vmul.f32 %v357, %v455
        %v554 = vmul.f32 %v358, %v456
        %v555 = vmul.f32 %v359, %v457
        %v556 = vmul.f32 %v360, %v458
        %v557 = vmul.f32 %v361, %v459
        %v558 = vmul.f32 %v362, %v460
        %v559 = vmul.f32 %v363, %v461
        %v560 = vmul.f32 %v364, %v462
        %v561 = vmul.f32 %v365, %v463
        %v562 = vmul.f32 %v366, %v464
        %v563 = vmul.f32 %v367, %v465
        %v564 = vmul.f32 %v368, %v466
        %v565 = vmul.f32 %v369, %v467
        %v566 = vmul.f32 %v370, %v468
        %v567 = vmul.f32 %v371, %v469
        %v568 = vmul.f32 %v372, %v470
        %v569 = vmul.f32 %v373, %v471
        %v570 = vmul.f32 %v374, %v472
        %v571 = vmul.f32 %v375, %v473
        %v572 = vmul.f32 %v376, %v474
        %v573 = vmul.f32 %v377, %v475
        %v574 = vmul.f32 %v378, %v476
        %v575 = vmul.f32 %v379, %v477
        %v576 = vmul.f32 %v380, %v478
        %v577 = vmul.f32 %v381, %v479
        %v578 = vmul.f32 %v382, %v480
        %v579 = vmul.f32 %v383, %v481
        %v580 = vmul.f32 %v384, %v482
        %v581 = vmul.f32 %v385, %v483
        %v582 = vmul.f32 %v386, %v484
        %v583 = vmul.f32 %v387, %v485
        %v584 = vmul.f32 %v388, %v486
        %v585 = vmul.f32 %v389, %v487
        %v586 = vmul.f32 %v390, %v488
        %v587 = vmul.f32 %v391, %v489
        %v588 = vmul.f32 %v392, %v490
        %v589 = vmul.f32 %v393, %v491
        %v590 = vmul.f32 %v394, %v492
        %v591 = vmul.f32 %v395, %v493
        %v592 = vmul.f32 %v396, %v494
        %v593 = vmul.f32 %v397, %v495
        %v594 = vmul.f32 %v398, %v496
        %v595 = vmul.f32 %v399, %v497
        %v596 = vmul.f32 %v400, %v498
        %v597 = vmul.f32 %v401, %v499
        %v598 = vmul.f32 %v402, %v500
        %v599 = vmul.f32 %v403, %v501
        %v600 = vmul.f32 %v404, %v502
        %v601 = vmul.f32 %v405, %v503
        %v602 = vmul.f32 %v406, %v504
        %v603 = vmul.f32 %v407, %v505
        %v604 = vmul.f32 %v408, %v506
        %v605 = vmul.f32 %v409, %v507
        %v606 = vmul.f32 %v410, %v508
        %v607 = vmul.f32 %v411, %v509
        %v608 = vmul.f32 %v412, %v510
        %v609 = vmul.f32 %v413, %v511
        %v610 = vmul.f32 %v414, %v512
        %v611 = vmul.f32 %v415, %v513
        %v612 = vmul.f32 %v416, %v514
        %v613 = vmul.f32 %v417, %v515
        %v614 = vmul.f32 %v418, %v516
        %v615 = vmul.f32 %v419, %v517
        %v616 = vmul.f32 %v420, %v518
        %v617 = vmul.f32 %v421, %v519
        %v618 = vmul.f32 %v422, %v520
        %v619 = vmul.f32 %v423, %v521
        %v620 = vmul.f32 %v424, %v522
        %v621 = vmul.f32 %v425, %v523
        %v622 = vmul.f32 %v426, %v524
        %v623 = vmul.f32 %v427, %v525
        %v624 = vmul.f32 %v428, %v526
        %v625 = vmul.f32 %v429, %v527
        %v626 = vmul.f32 %v430, %v528
        %v627 = vmul.f32 %v235, 21.0
        %v628 = vmul.f32 %v236, 21.0
        %v629 = vmul.f32 %v237, 21.0
        %v630 = vmul.f32 %v238, 21.0
        %v631 = vmul.f32 %v239, 21.0
        %v632 = vmul.f32 %v240, 21.0
        %v633 = vmul.f32 %v241, 21.0
        %v634 = vmul.f32 %v242, 21.0
        %v635 = vmul.f32 %v243, 21.0
        %v636 = vmul.f32 %v244, 21.0
        %v637 = vmul.f32 %v245, 21.0
        %v638 = vmul.f32 %v246, 21.0
        %v639 = vmul.f32 %v247, 21.0
        %v640 = vmul.f32 %v248, 21.0
        %v641 = vmul.f32 %v249, 21.0
        %v642 = vmul.f32 %v250, 21.0
        %v643 = vmul.f32 %v251, 21.0
        %v644 = vmul.f32 %v252, 21.0
        %v645 = vmul.f32 %v253, 21.0
        %v646 = vmul.f32 %v254, 21.0
        %v647 = vmul.f32 %v255, 21.0
        %v648 = vmul.f32 %v256, 21.0
        %v649 = vmul.f32 %v257, 21.0
        %v650 = vmul.f32 %v258, 21.0
        %v651 = vmul.f32 %v259, 21.0
        %v652 = vmul.f32 %v260, 21.0
        %v653 = vmul.f32 %v261, 21.0
        %v654 = vmul.f32 %v262, 21.0
        %v655 = vmul.f32 %v263, 21.0
        %v656 = vmul.f32 %v264, 21.0
        %v657 = vmul.f32 %v265, 21.0
        %v658 = vmul.f32 %v266, 21.0
        %v659 = vmul.f32 %v267, 21.0
        %v660 = vmul.f32 %v268, 21.0
        %v661 = vmul.f32 %v269, 21.0
        %v662 = vmul.f32 %v270, 21.0
        %v663 = vmul.f32 %v271, 21.0
        %v664 = vmul.f32 %v272, 21.0
        %v665 = vmul.f32 %v273, 21.0
        %v666 = vmul.f32 %v274, 21.0
        %v667 = vmul.f32 %v275, 21.0
        %v668 = vmul.f32 %v276, 21.0
        %v669 = vmul.f32 %v277, 21.0
        %v670 = vmul.f32 %v278, 21.0
        %v671 = vmul.f32 %v279, 21.0
        %v672 = vmul.f32 %v280, 21.0
        %v673 = vmul.f32 %v281, 21.0
        %v674 = vmul.f32 %v282, 21.0
        %v675 = vmul.f32 %v283, 21.0
        %v676 = vmul.f32 %v284, 21.0
        %v677 = vmul.f32 %v285, 21.0
        %v678 = vmul.f32 %v286, 21.0
        %v679 = vmul.f32 %v287, 21.0
        %v680 = vmul.f32 %v288, 21.0
        %v681 = vmul.f32 %v289, 21.0
        %v682 = vmul.f32 %v290, 21.0
        %v683 = vmul.f32 %v291, 21.0
        %v684 = vmul.f32 %v292, 21.0
        %v685 = vmul.f32 %v293, 21.0
        %v686 = vmul.f32 %v294, 21.0
        %v687 = vmul.f32 %v295, 21.0
        %v688 = vmul.f32 %v296, 21.0
        %v689 = vmul.f32 %v297, 21.0
        %v690 = vmul.f32 %v298, 21.0
        %v691 = vmul.f32 %v299, 21.0
        %v692 = vmul.f32 %v300, 21.0
        %v693 = vmul.f32 %v301, 21.0
        %v694 = vmul.f32 %v302, 21.0
        %v695 = vmul.f32 %v303, 21.0
        %v696 = vmul.f32 %v304, 21.0
        %v697 = vmul.f32 %v305, 21.0
        %v698 = vmul.f32 %v306, 21.0
        %v699 = vmul.f32 %v307, 21.0
        %v700 = vmul.f32 %v308, 21.0
        %v701 = vmul.f32 %v309, 21.0
        %v702 = vmul.f32 %v310, 21.0
        %v703 = vmul.f32 %v311, 21.0
        %v704 = vmul.f32 %v312, 21.0
        %v705 = vmul.f32 %v313, 21.0
        %v706 = vmul.f32 %v314, 21.0
        %v707 = vmul.f32 %v315, 21.0
        %v708 = vmul.f32 %v316, 21.0
        %v709 = vmul.f32 %v317, 21.0
        %v710 = vmul.f32 %v318, 21.0
        %v711 = vmul.f32 %v319, 21.0
        %v712 = vmul.f32 %v320, 21.0
        %v713 = vmul.f32 %v321, 21.0
        %v714 = vmul.f32 %v322, 21.0
        %v715 = vmul.f32 %v323, 21.0
        %v716 = vmul.f32 %v324, 21.0
        %v717 = vmul.f32 %v325, 21.0
        %v718 = vmul.f32 %v326, 21.0
        %v719 = vmul.f32 %v327, 21.0
        %v720 = vmul.f32 %v328, 21.0
        %v721 = vmul.f32 %v329, 21.0
        %v722 = vmul.f32 %v330, 21.0
        %v723 = vmul.f32 %v331, 21.0
        %v724 = vmul.f32 %v332, 21.0
        %v725 = vsub.f32 48.0, %v627
        %v726 = vsub.f32 48.0, %v628
        %v727 = vsub.f32 48.0, %v629
        %v728 = vsub.f32 48.0, %v630
        %v729 = vsub.f32 48.0, %v631
        %v730 = vsub.f32 48.0, %v632
        %v731 = vsub.f32 48.0, %v633
        %v732 = vsub.f32 48.0, %v634
        %v733 = vsub.f32 48.0, %v635
        %v734 = vsub.f32 48.0, %v636
        %v735 = vsub.f32 48.0, %v637
        %v736 = vsub.f32 48.0, %v638
        %v737 = vsub.f32 48.0, %v639
        %v738 = vsub.f32 48.0, %v640
        %v739 = vsub.f32 48.0, %v641
        %v740 = vsub.f32 48.0, %v642
        %v741 = vsub.f32 48.0, %v643
        %v742 = vsub.f32 48.0, %v644
        %v743 = vsub.f32 48.0, %v645
        %v744 = vsub.f32 48.0, %v646
        %v745 = vsub.f32 48.0, %v647
        %v746 = vsub.f32 48.0, %v648
        %v747 = vsub.f32 48.0, %v649
        %v748 = vsub.f32 48.0, %v650
        %v749 = vsub.f32 48.0, %v651
        %v750 = vsub.f32 48.0, %v652
        %v751 = vsub.f32 48.0, %v653
        %v752 = vsub.f32 48.0, %v654
        %v753 = vsub.f32 48.0, %v655
        %v754 = vsub.f32 48.0, %v656
        %v755 = vsub.f32 48.0, %v657
        %v756 = vsub.f32 48.0, %v658
        %v757 = vsub.f32 48.0, %v659
        %v758 = vsub.f32 48.0, %v660
        %v759 = vsub.f32 48.0, %v661
        %v760 = vsub.f32 48.0, %v662
        %v761 = vsub.f32 48.0, %v663
        %v762 = vsub.f32 48.0, %v664
        %v763 = vsub.f32 48.0, %v665
        %v764 = vsub.f32 48.0, %v666
        %v765 = vsub.f32 48.0, %v667
        %v766 = vsub.f32 48.0, %v668
        %v767 = vsub.f32 48.0, %v669
        %v768 = vsub.f32 48.0, %v670
        %v769 = vsub.f32 48.0, %v671
        %v770 = vsub.f32 48.0, %v672
        %v771 = vsub.f32 48.0, %v673
        %v772 = vsub.f32 48.0, %v674
        %v773 = vsub.f32 48.0, %v675
        %v774 = vsub.f32 48.0, %v676
        %v775 = vsub.f32 48.0, %v677
        %v776 = vsub.f32 48.0, %v678
        %v777 = vsub.f32 48.0, %v679
        %v778 = vsub.f32 48.0, %v680
        %v779 = vsub.f32 48.0, %v681
        %v780 = vsub.f32 48.0, %v682
        %v781 = vsub.f32 48.0, %v683
        %v782 = vsub.f32 48.0, %v684
        %v783 = vsub.f32 48.0, %v685
        %v784 = vsub.f32 48.0, %v686
        %v785 = vsub.f32 48.0, %v687
        %v786 = vsub.f32 48.0, %v688
        %v787 = vsub.f32 48.0, %v689
        %v788 = vsub.f32 48.0, %v690
        %v789 = vsub.f32 48.0, %v691
        %v790 = vsub.f32 48.0, %v692
        %v791 = vsub.f32 48.0, %v693
        %v792 = vsub.f32 48.0, %v694
        %v793 = vsub.f32 48.0, %v695
        %v794 = vsub.f32 48.0, %v696
        %v795 = vsub.f32 48.0, %v697
        %v796 = vsub.f32 48.0, %v698
        %v797 = vsub.f32 48.0, %v699
        %v798 = vsub.f32 48.0, %v700
        %v799 = vsub.f32 48.0, %v701
        %v800 = vsub.f32 48.0, %v702
        %v801 = vsub.f32 48.0, %v703
        %v802 = vsub.f32 48.0, %v704
        %v803 = vsub.f32 48.0, %v705
        %v804 = vsub.f32 48.0, %v706
        %v805 = vsub.f32 48.0, %v707
        %v806 = vsub.f32 48.0, %v708
        %v807 = vsub.f32 48.0, %v709
        %v808 = vsub.f32 48.0, %v710
        %v809 = vsub.f32 48.0, %v711
        %v810 = vsub.f32 48.0, %v712
        %v811 = vsub.f32 48.0, %v713
        %v812 = vsub.f32 48.0, %v714
        %v813 = vsub.f32 48.0, %v715
        %v814 = vsub.f32 48.0, %v716
        %v815 = vsub.f32 48.0, %v717
        %v816 = vsub.f32 48.0, %v718
        %v817 = vsub.f32 48.0, %v719
        %v818 = vsub.f32 48.0, %v720
        %v819 = vsub.f32 48.0, %v721
        %v820 = vsub.f32 48.0, %v722
        %v821 = vsub.f32 48.0, %v723
        %v822 = vsub.f32 48.0, %v724
        %v823 = vmul.f32 %v235, %v725
        %v824 = vmul.f32 %v236, %v726
        %v825 = vmul.f32 %v237, %v727
        %v826 = vmul.f32 %v238, %v728
        %v827 = vmul.f32 %v239, %v729
        %v828 = vmul.f32 %v240, %v730
        %v829 = vmul.f32 %v241, %v731
        %v830 = vmul.f32 %v242, %v732
        %v831 = vmul.f32 %v243, %v733
        %v832 = vmul.f32 %v244, %v734
        %v833 = vmul.f32 %v245, %v735
        %v834 = vmul.f32 %v246, %v736
        %v835 = vmul.f32 %v247, %v737
        %v836 = vmul.f32 %v248, %v738
        %v837 = vmul.f32 %v249, %v739
        %v838 = vmul.f32 %v250, %v740
        %v839 = vmul.f32 %v251, %v741
        %v840 = vmul.f32 %v252, %v742
        %v841 = vmul.f32 %v253, %v743
        %v842 = vmul.f32 %v254, %v744
        %v843 = vmul.f32 %v255, %v745
        %v844 = vmul.f32 %v256, %v746
        %v845 = vmul.f32 %v257, %v747
        %v846 = vmul.f32 %v258, %v748
        %v847 = vmul.f32 %v259, %v749
        %v848 = vmul.f32 %v260, %v750
        %v849 = vmul.f32 %v261, %v751
        %v850 = vmul.f32 %v262, %v752
        %v851 = vmul.f32 %v263, %v753
        %v852 = vmul.f32 %v264, %v754
        %v853 = vmul.f32 %v265, %v755
        %v854 = vmul.f32 %v266, %v756
        %v855 = vmul.f32 %v267, %v757
        %v856 = vmul.f32 %v268, %v758
        %v857 = vmul.f32 %v269, %v759
        %v858 = vmul.f32 %v270, %v760
        %v859 = vmul.f32 %v271, %v761
        %v860 = vmul.f32 %v272, %v762
        %v861 = vmul.f32 %v273, %v763
        %v862 = vmul.f32 %v274, %v764
        %v863 = vmul.f32 %v275, %v765
        %v864 = vmul.f32 %v276, %v766
        %v865 = vmul.f32 %v277, %v767
        %v866 = vmul.f32 %v278, %v768
        %v867 = vmul.f32 %v279, %v769
        %v868 = vmul.f32 %v280, %v770
        %v869 = vmul.f32 %v281, %v771
        %v870 = vmul.f32 %v282, %v772
        %v871 = vmul.f32 %v283, %v773
        %v872 = vmul.f32 %v284, %v774
        %v873 = vmul.f32 %v285, %v775
        %v874 = vmul.f32 %v286, %v776
        %v875 = vmul.f32 %v287, %v777
        %v876 = vmul.f32 %v288, %v778
        %v877 = vmul.f32 %v289, %v779
        %v878 = vmul.f32 %v290, %v780
        %v879 = vmul.f32 %v291, %v781
        %v880 = vmul.f32 %v292, %v782
        %v881 = vmul.f32 %v293, %v783
        %v882 = vmul.f32 %v294, %v784
        %v883 = vmul.f32 %v295, %v785
        %v884 = vmul.f32 %v296, %v786
        %v885 = vmul.f32 %v297, %v787
        %v886 = vmul.f32 %v298, %v788
        %v887 = vmul.f32 %v299, %v789
        %v888 = vmul.f32 %v300, %v790
        %v889 = vmul.f32 %v301, %v791
        %v890 = vmul.f32 %v302, %v792
        %v891 = vmul.f32 %v303, %v793
        %v892 = vmul.f32 %v304, %v794
        %v893 = vmul.f32 %v305, %v795
        %v894 = vmul.f32 %v306, %v796
        %v895 = vmul.f32 %v307, %v797
        %v896 = vmul.f32 %v308, %v798
        %v897 = vmul.f32 %v309, %v799
        %v898 = vmul.f32 %v310, %v800
        %v899 = vmul.f32 %v311, %v801
        %v900 = vmul.f32 %v312, %v802
        %v901 = vmul.f32 %v313, %v803
        %v902 = vmul.f32 %v314, %v804
        %v903 = vmul.f32 %v315, %v805
        %v904 = vmul.f32 %v316, %v806
        %v905 = vmul.f32 %v317, %v807
        %v906 = vmul.f32 %v318, %v808
        %v907 = vmul.f32 %v319, %v809
        %v908 = vmul.f32 %v320, %v810
        %v909 = vmul.f32 %v321, %v811
        %v910 = vmul.f32 %v322, %v812
        %v911 = vmul.f32 %v323, %v813
        %v912 = vmul.f32 %v324, %v814
        %v913 = vmul.f32 %v325, %v815
        %v914 = vmul.f32 %v326, %v816
        %v915 = vmul.f32 %v327, %v817
        %v916 = vmul.f32 %v328, %v818
        %v917 = vmul.f32 %v329, %v819
        %v918 = vmul.f32 %v330, %v820
        %v919 = vmul.f32 %v331, %v821
        %v920 = vmul.f32 %v332, %v822
        %v921 = vadd.f32 %v823, -28.0
        %v922 = vadd.f32 %v824, -28.0
        %v923 = vadd.f32 %v825, -28.0
        %v924 = vadd.f32 %v826, -28.0
        %v925 = vadd.f32 %v827, -28.0
        %v926 = vadd.f32 %v828, -28.0
        %v927 = vadd.f32 %v829, -28.0
        %v928 = vadd.f32 %v830, -28.0
        %v929 = vadd.f32 %v831, -28.0
        %v930 = vadd.f32 %v832, -28.0
        %v931 = vadd.f32 %v833, -28.0
        %v932 = vadd.f32 %v834, -28.0
        %v933 = vadd.f32 %v835, -28.0
        %v934 = vadd.f32 %v836, -28.0
        %v935 = vadd.f32 %v837, -28.0
        %v936 = vadd.f32 %v838, -28.0
        %v937 = vadd.f32 %v839, -28.0
        %v938 = vadd.f32 %v840, -28.0
        %v939 = vadd.f32 %v841, -28.0
        %v940 = vadd.f32 %v842, -28.0
        %v941 = vadd.f32 %v843, -28.0
        %v942 = vadd.f32 %v844, -28.0
        %v943 = vadd.f32 %v845, -28.0
        %v944 = vadd.f32 %v846, -28.0
        %v945 = vadd.f32 %v847, -28.0
        %v946 = vadd.f32 %v848, -28.0
        %v947 = vadd.f32 %v849, -28.0
        %v948 = vadd.f32 %v850, -28.0
        %v949 = vadd.f32 %v851, -28.0
        %v950 = vadd.f32 %v852, -28.0
        %v951 = vadd.f32 %v853, -28.0
        %v952 = vadd.f32 %v854, -28.0
        %v953 = vadd.f32 %v855, -28.0
        %v954 = vadd.f32 %v856, -28.0
        %v955 = vadd.f32 %v857, -28.0
        %v956 = vadd.f32 %v858, -28.0
        %v957 = vadd.f32 %v859, -28.0
        %v958 = vadd.f32 %v860, -28.0
        %v959 = vadd.f32 %v861, -28.0
        %v960 = vadd.f32 %v862, -28.0
        %v961 = vadd.f32 %v863, -28.0
        %v962 = vadd.f32 %v864, -28.0
        %v963 = vadd.f32 %v865, -28.0
        %v964 = vadd.f32 %v866, -28.0
        %v965 = vadd.f32 %v867, -28.0
        %v966 = vadd.f32 %v868, -28.0
        %v967 = vadd.f32 %v869, -28.0
        %v968 = vadd.f32 %v870, -28.0
        %v969 = vadd.f32 %v871, -28.0
        %v970 = vadd.f32 %v872, -28.0
        %v971 = vadd.f32 %v873, -28.0
        %v972 = vadd.f32 %v874, -28.0
        %v973 = vadd.f32 %v875, -28.0
        %v974 = vadd.f32 %v876, -28.0
        %v975 = vadd.f32 %v877, -28.0
        %v976 = vadd.f32 %v878, -28.0
        %v977 = vadd.f32 %v879, -28.0
        %v978 = vadd.f32 %v880, -28.0
        %v979 = vadd.f32 %v881, -28.0
        %v980 = vadd.f32 %v882, -28.0
        %v981 = vadd.f32 %v883, -28.0
        %v982 = vadd.f32 %v884, -28.0
        %v983 = vadd.f32 %v885, -28.0
        %v984 = vadd.f32 %v886, -28.0
        %v985 = vadd.f32 %v887, -28.0
        %v986 = vadd.f32 %v888, -28.0
        %v987 = vadd.f32 %v889, -28.0
        %v988 = vadd.f32 %v890, -28.0
        %v989 = vadd.f32 %v891, -28.0
        %v990 = vadd.f32 %v892, -28.0
        %v991 = vadd.f32 %v893, -28.0
        %v992 = vadd.f32 %v894, -28.0
        %v993 = vadd.f32 %v895, -28.0
        %v994 = vadd.f32 %v896, -28.0
        %v995 = vadd.f32 %v897, -28.0
        %v996 = vadd.f32 %v898, -28.0
        %v997 = vadd.f32 %v899, -28.0
        %v998 = vadd.f32 %v900, -28.0
        %v999 = vadd.f32 %v901, -28.0
        %v1000 = vadd.f32 %v902, -28.0
        %v1001 = vadd.f32 %v903, -28.0
        %v1002 = vadd.f32 %v904, -28.0
        %v1003 = vadd.f32 %v905, -28.0
        %v1004 = vadd.f32 %v906, -28.0
        %v1005 = vadd.f32 %v907, -28.0
        %v1006 = vadd.f32 %v908, -28.0
        %v1007 = vadd.f32 %v909, -28.0
        %v1008 = vadd.f32 %v910, -28.0
        %v1009 = vadd.f32 %v911, -28.0
        %v1010 = vadd.f32 %v912, -28.0
        %v1011 = vadd.f32 %v913, -28.0
        %v1012 = vadd.f32 %v914, -28.0
        %v1013 = vadd.f32 %v915, -28.0
        %v1014 = vadd.f32 %v916, -28.0
        %v1015 = vadd.f32 %v917, -28.0
        %v1016 = vadd.f32 %v918, -28.0
        %v1017 = vadd.f32 %v919, -28.0
        %v1018 = vadd.f32 %v920, -28.0
        %v1019 = vmul.f32 %v529, %v921
        %v1020 = vmul.f32 %v530, %v922
        %v1021 = vmul.f32 %v531, %v923
        %v1022 = vmul.f32 %v532, %v924
        %v1023 = vmul.f32 %v533, %v925
        %v1024 = vmul.f32 %v534, %v926
        %v1025 = vmul.f32 %v535, %v927
        %v1026 = vmul.f32 %v536, %v928
        %v1027 = vmul.f32 %v537, %v929
        %v1028 = vmul.f32 %v538, %v930
        %v1029 = vmul.f32 %v539, %v931
        %v1030 = vmul.f32 %v540, %v932
        %v1031 = vmul.f32 %v541, %v933
        %v1032 = vmul.f32 %v542, %v934
        %v1033 = vmul.f32 %v543, %v935
        %v1034 = vmul.f32 %v544, %v936
        %v1035 = vmul.f32 %v545, %v937
        %v1036 = vmul.f32 %v546, %v938
        %v1037 = vmul.f32 %v547, %v939
        %v1038 = vmul.f32 %v548, %v940
        %v1039 = vmul.f32 %v549, %v941
        %v1040 = vmul.f32 %v550, %v942
        %v1041 = vmul.f32 %v551, %v943
        %v1042 = vmul.f32 %v552, %v944
        %v1043 = vmul.f32 %v553, %v945
        %v1044 = vmul.f32 %v554, %v946
        %v1045 = vmul.f32 %v555, %v947
        %v1046 = vmul.f32 %v556, %v948
        %v1047 = vmul.f32 %v557, %v949
        %v1048 = vmul.f32 %v558, %v950
        %v1049 = vmul.f32 %v559, %v951
        %v1050 = vmul.f32 %v560, %v952
        %v1051 = vmul.f32 %v561, %v953
        %v1052 = vmul.f32 %v562, %v954
        %v1053 = vmul.f32 %v563, %v955
        %v1054 = vmul.f32 %v564, %v956
        %v1055 = vmul.f32 %v565, %v957
        %v1056 = vmul.f32 %v566, %v958
        %v1057 = vmul.f32 %v567, %v959
        %v1058 = vmul.f32 %v568, %v960
        %v1059 = vmul.f32 %v569, %v961
        %v1060 = vmul.f32 %v570, %v962
        %v1061 = vmul.f32 %v571, %v963
        %v1062 = vmul.f32 %v572, %v964
        %v1063 = vmul.f32 %v573, %v965
        %v1064 = vmul.f32 %v574, %v966
        %v1065 = vmul.f32 %v575, %v967
        %v1066 = vmul.f32 %v576, %v968
        %v1067 = vmul.f32 %v577, %v969
        %v1068 = vmul.f32 %v578, %v970
        %v1069 = vmul.f32 %v579, %v971
        %v1070 = vmul.f32 %v580, %v972
        %v1071 = vmul.f32 %v581, %v973
        %v1072 = vmul.f32 %v582, %v974
        %v1073 = vmul.f32 %v583, %v975
        %v1074 = vmul.f32 %v584, %v976
        %v1075 = vmul.f32 %v585, %v977
        %v1076 = vmul.f32 %v586, %v978
        %v1077 = vmul.f32 %v587, %v979
        %v1078 = vmul.f32 %v588, %v980
        %v1079 = vmul.f32 %v589, %v981
        %v1080 = vmul.f32 %v590, %v982
        %v1081 = vmul.f32 %v591, %v983
        %v1082 = vmul.f32 %v592, %v984
        %v1083 = vmul.f32 %v593, %v985
        %v1084 = vmul.f32 %v594, %v986
        %v1085 = vmul.f32 %v595, %v987
        %v1086 = vmul.f32 %v596, %v988
        %v1087 = vmul.f32 %v597, %v989
        %v1088 = vmul.f32 %v598, %v990
        %v1089 = vmul.f32 %v599, %v991
        %v1090 = vmul.f32 %v600, %v992
        %v1091 = vmul.f32 %v601, %v993
        %v1092 = vmul.f32 %v602, %v994
        %v1093 = vmul.f32 %v603, %v995
        %v1094 = vmul.f32 %v604, %v996
        %v1095 = vmul.f32 %v605, %v997
        %v1096 = vmul.f32 %v606, %v998
        %v1097 = vmul.f32 %v607, %v999
        %v1098 = vmul.f32 %v608, %v1000
        %v1099 = vmul.f32 %v609, %v1001
        %v1100 = vmul.f32 %v610, %v1002
        %v1101 = vmul.f32 %v611, %v1003
        %v1102 = vmul.f32 %v612, %v1004
        %v1103 = vmul.f32 %v613, %v1005
        %v1104 = vmul.f32 %v614, %v1006
        %v1105 = vmul.f32 %v615, %v1007
        %v1106 = vmul.f32 %v616, %v1008
        %v1107 = vmul.f32 %v617, %v1009
        %v1108 = vmul.f32 %v618, %v1010
        %v1109 = vmul.f32 %v619, %v1011
        %v1110 = vmul.f32 %v620, %v1012
        %v1111 = vmul.f32 %v621, %v1013
        %v1112 = vmul.f32 %v622, %v1014
        %v1113 = vmul.f32 %v623, %v1015
        %v1114 = vmul.f32 %v624, %v1016
        %v1115 = vmul.f32 %v625, %v1017
        %v1116 = vmul.f32 %v626, %v1018
        %v1117 = vadd.f32 %v1019, 1.0
        %v1118 = vadd.f32 %v1020, 1.0
        %v1119 = vadd.f32 %v1021, 1.0
        %v1120 = vadd.f32 %v1022, 1.0
        %v1121 = vadd.f32 %v1023, 1.0
        %v1122 = vadd.f32 %v1024, 1.0
        %v1123 = vadd.f32 %v1025, 1.0
        %v1124 = vadd.f32 %v1026, 1.0
        %v1125 = vadd.f32 %v1027, 1.0
        %v1126 = vadd.f32 %v1028, 1.0
        %v1127 = vadd.f32 %v1029, 1.0
        %v1128 = vadd.f32 %v1030, 1.0
        %v1129 = vadd.f32 %v1031, 1.0
        %v1130 = vadd.f32 %v1032, 1.0
        %v1131 = vadd.f32 %v1033, 1.0
        %v1132 = vadd.f32 %v1034, 1.0
        %v1133 = vadd.f32 %v1035, 1.0
        %v1134 = vadd.f32 %v1036, 1.0
        %v1135 = vadd.f32 %v1037, 1.0
        %v1136 = vadd.f32 %v1038, 1.0
        %v1137 = vadd.f32 %v1039, 1.0
        %v1138 = vadd.f32 %v1040, 1.0
        %v1139 = vadd.f32 %v1041, 1.0
        %v1140 = vadd.f32 %v1042, 1.0
        %v1141 = vadd.f32 %v1043, 1.0
        %v1142 = vadd.f32 %v1044, 1.0
        %v1143 = vadd.f32 %v1045, 1.0
        %v1144 = vadd.f32 %v1046, 1.0
        %v1145 = vadd.f32 %v1047, 1.0
        %v1146 = vadd.f32 %v1048, 1.0
        %v1147 = vadd.f32 %v1049, 1.0
        %v1148 = vadd.f32 %v1050, 1.0
        %v1149 = vadd.f32 %v1051, 1.0
        %v1150 = vadd.f32 %v1052, 1.0
        %v1151 = vadd.f32 %v1053, 1.0
        %v1152 = vadd.f32 %v1054, 1.0
        %v1153 = vadd.f32 %v1055, 1.0
        %v1154 = vadd.f32 %v1056, 1.0
        %v1155 = vadd.f32 %v1057, 1.0
        %v1156 = vadd.f32 %v1058, 1.0
        %v1157 = vadd.f32 %v1059, 1.0
        %v1158 = vadd.f32 %v1060, 1.0
        %v1159 = vadd.f32 %v1061, 1.0
        %v1160 = vadd.f32 %v1062, 1.0
        %v1161 = vadd.f32 %v1063, 1.0
        %v1162 = vadd.f32 %v1064, 1.0
        %v1163 = vadd.f32 %v1065, 1.0
        %v1164 = vadd.f32 %v1066, 1.0
        %v1165 = vadd.f32 %v1067, 1.0
        %v1166 = vadd.f32 %v1068, 1.0
        %v1167 = vadd.f32 %v1069, 1.0
        %v1168 = vadd.f32 %v1070, 1.0
        %v1169 = vadd.f32 %v1071, 1.0
        %v1170 = vadd.f32 %v1072, 1.0
        %v1171 = vadd.f32 %v1073, 1.0
        %v1172 = vadd.f32 %v1074, 1.0
        %v1173 = vadd.f32 %v1075, 1.0
        %v1174 = vadd.f32 %v1076, 1.0
        %v1175 = vadd.f32 %v1077, 1.0
        %v1176 = vadd.f32 %v1078, 1.0
        %v1177 = vadd.f32 %v1079, 1.0
        %v1178 = vadd.f32 %v1080, 1.0
        %v1179 = vadd.f32 %v1081, 1.0
        %v1180 = vadd.f32 %v1082, 1.0
        %v1181 = vadd.f32 %v1083, 1.0
        %v1182 = vadd.f32 %v1084, 1.0
        %v1183 = vadd.f32 %v1085, 1.0
        %v1184 = vadd.f32 %v1086, 1.0
        %v1185 = vadd.f32 %v1087, 1.0
        %v1186 = vadd.f32 %v1088, 1.0
        %v1187 = vadd.f32 %v1089, 1.0
        %v1188 = vadd.f32 %v1090, 1.0
        %v1189 = vadd.f32 %v1091, 1.0
        %v1190 = vadd.f32 %v1092, 1.0
        %v1191 = vadd.f32 %v1093, 1.0
        %v1192 = vadd.f32 %v1094, 1.0
        %v1193 = vadd.f32 %v1095, 1.0
        %v1194 = vadd.f32 %v1096, 1.0
        %v1195 = vadd.f32 %v1097, 1.0
        %v1196 = vadd.f32 %v1098, 1.0
        %v1197 = vadd.f32 %v1099, 1.0
        %v1198 = vadd.f32 %v1100, 1.0
        %v1199 = vadd.f32 %v1101, 1.0
        %v1200 = vadd.f32 %v1102, 1.0
        %v1201 = vadd.f32 %v1103, 1.0
        %v1202 = vadd.f32 %v1104, 1.0
        %v1203 = vadd.f32 %v1105, 1.0
        %v1204 = vadd.f32 %v1106, 1.0
        %v1205 = vadd.f32 %v1107, 1.0
        %v1206 = vadd.f32 %v1108, 1.0
        %v1207 = vadd.f32 %v1109, 1.0
        %v1208 = vadd.f32 %v1110, 1.0
        %v1209 = vadd.f32 %v1111, 1.0
        %v1210 = vadd.f32 %v1112, 1.0
        %v1211 = vadd.f32 %v1113, 1.0
        %v1212 = vadd.f32 %v1114, 1.0
        %v1213 = vadd.f32 %v1115, 1.0
        %v1214 = vadd.f32 %v1116, 1.0
        %vm1215 = vcmp.lt.f32.partialorder %v235, 1.0
        %vm1216 = vcmp.lt.f32.partialorder %v236, 1.0
        %vm1217 = vcmp.lt.f32.partialorder %v237, 1.0
        %vm1218 = vcmp.lt.f32.partialorder %v238, 1.0
        %vm1219 = vcmp.lt.f32.partialorder %v239, 1.0
        %vm1220 = vcmp.lt.f32.partialorder %v240, 1.0
        %vm1221 = vcmp.lt.f32.partialorder %v241, 1.0
        %vm1222 = vcmp.lt.f32.partialorder %v242, 1.0
        %vm1223 = vcmp.lt.f32.partialorder %v243, 1.0
        %vm1224 = vcmp.lt.f32.partialorder %v244, 1.0
        %vm1225 = vcmp.lt.f32.partialorder %v245, 1.0
        %vm1226 = vcmp.lt.f32.partialorder %v246, 1.0
        %vm1227 = vcmp.lt.f32.partialorder %v247, 1.0
        %vm1228 = vcmp.lt.f32.partialorder %v248, 1.0
        %vm1229 = vcmp.lt.f32.partialorder %v249, 1.0
        %vm1230 = vcmp.lt.f32.partialorder %v250, 1.0
        %vm1231 = vcmp.lt.f32.partialorder %v251, 1.0
        %vm1232 = vcmp.lt.f32.partialorder %v252, 1.0
        %vm1233 = vcmp.lt.f32.partialorder %v253, 1.0
        %vm1234 = vcmp.lt.f32.partialorder %v254, 1.0
        %vm1235 = vcmp.lt.f32.partialorder %v255, 1.0
        %vm1236 = vcmp.lt.f32.partialorder %v256, 1.0
        %vm1237 = vcmp.lt.f32.partialorder %v257, 1.0
        %vm1238 = vcmp.lt.f32.partialorder %v258, 1.0
        %vm1239 = vcmp.lt.f32.partialorder %v259, 1.0
        %vm1240 = vcmp.lt.f32.partialorder %v260, 1.0
        %vm1241 = vcmp.lt.f32.partialorder %v261, 1.0
        %vm1242 = vcmp.lt.f32.partialorder %v262, 1.0
        %vm1243 = vcmp.lt.f32.partialorder %v263, 1.0
        %vm1244 = vcmp.lt.f32.partialorder %v264, 1.0
        %vm1245 = vcmp.lt.f32.partialorder %v265, 1.0
        %vm1246 = vcmp.lt.f32.partialorder %v266, 1.0
        %vm1247 = vcmp.lt.f32.partialorder %v267, 1.0
        %vm1248 = vcmp.lt.f32.partialorder %v268, 1.0
        %vm1249 = vcmp.lt.f32.partialorder %v269, 1.0
        %vm1250 = vcmp.lt.f32.partialorder %v270, 1.0
        %vm1251 = vcmp.lt.f32.partialorder %v271, 1.0
        %vm1252 = vcmp.lt.f32.partialorder %v272, 1.0
        %vm1253 = vcmp.lt.f32.partialorder %v273, 1.0
        %vm1254 = vcmp.lt.f32.partialorder %v274, 1.0
        %vm1255 = vcmp.lt.f32.partialorder %v275, 1.0
        %vm1256 = vcmp.lt.f32.partialorder %v276, 1.0
        %vm1257 = vcmp.lt.f32.partialorder %v277, 1.0
        %vm1258 = vcmp.lt.f32.partialorder %v278, 1.0
        %vm1259 = vcmp.lt.f32.partialorder %v279, 1.0
        %vm1260 = vcmp.lt.f32.partialorder %v280, 1.0
        %vm1261 = vcmp.lt.f32.partialorder %v281, 1.0
        %vm1262 = vcmp.lt.f32.partialorder %v282, 1.0
        %vm1263 = vcmp.lt.f32.partialorder %v283, 1.0
        %vm1264 = vcmp.lt.f32.partialorder %v284, 1.0
        %vm1265 = vcmp.lt.f32.partialorder %v285, 1.0
        %vm1266 = vcmp.lt.f32.partialorder %v286, 1.0
        %vm1267 = vcmp.lt.f32.partialorder %v287, 1.0
        %vm1268 = vcmp.lt.f32.partialorder %v288, 1.0
        %vm1269 = vcmp.lt.f32.partialorder %v289, 1.0
        %vm1270 = vcmp.lt.f32.partialorder %v290, 1.0
        %vm1271 = vcmp.lt.f32.partialorder %v291, 1.0
        %vm1272 = vcmp.lt.f32.partialorder %v292, 1.0
        %vm1273 = vcmp.lt.f32.partialorder %v293, 1.0
        %vm1274 = vcmp.lt.f32.partialorder %v294, 1.0
        %vm1275 = vcmp.lt.f32.partialorder %v295, 1.0
        %vm1276 = vcmp.lt.f32.partialorder %v296, 1.0
        %vm1277 = vcmp.lt.f32.partialorder %v297, 1.0
        %vm1278 = vcmp.lt.f32.partialorder %v298, 1.0
        %vm1279 = vcmp.lt.f32.partialorder %v299, 1.0
        %vm1280 = vcmp.lt.f32.partialorder %v300, 1.0
        %vm1281 = vcmp.lt.f32.partialorder %v301, 1.0
        %vm1282 = vcmp.lt.f32.partialorder %v302, 1.0
        %vm1283 = vcmp.lt.f32.partialorder %v303, 1.0
        %vm1284 = vcmp.lt.f32.partialorder %v304, 1.0
        %vm1285 = vcmp.lt.f32.partialorder %v305, 1.0
        %vm1286 = vcmp.lt.f32.partialorder %v306, 1.0
        %vm1287 = vcmp.lt.f32.partialorder %v307, 1.0
        %vm1288 = vcmp.lt.f32.partialorder %v308, 1.0
        %vm1289 = vcmp.lt.f32.partialorder %v309, 1.0
        %vm1290 = vcmp.lt.f32.partialorder %v310, 1.0
        %vm1291 = vcmp.lt.f32.partialorder %v311, 1.0
        %vm1292 = vcmp.lt.f32.partialorder %v312, 1.0
        %vm1293 = vcmp.lt.f32.partialorder %v313, 1.0
        %vm1294 = vcmp.lt.f32.partialorder %v314, 1.0
        %vm1295 = vcmp.lt.f32.partialorder %v315, 1.0
        %vm1296 = vcmp.lt.f32.partialorder %v316, 1.0
        %vm1297 = vcmp.lt.f32.partialorder %v317, 1.0
        %vm1298 = vcmp.lt.f32.partialorder %v318, 1.0
        %vm1299 = vcmp.lt.f32.partialorder %v319, 1.0
        %vm1300 = vcmp.lt.f32.partialorder %v320, 1.0
        %vm1301 = vcmp.lt.f32.partialorder %v321, 1.0
        %vm1302 = vcmp.lt.f32.partialorder %v322, 1.0
        %vm1303 = vcmp.lt.f32.partialorder %v323, 1.0
        %vm1304 = vcmp.lt.f32.partialorder %v324, 1.0
        %vm1305 = vcmp.lt.f32.partialorder %v325, 1.0
        %vm1306 = vcmp.lt.f32.partialorder %v326, 1.0
        %vm1307 = vcmp.lt.f32.partialorder %v327, 1.0
        %vm1308 = vcmp.lt.f32.partialorder %v328, 1.0
        %vm1309 = vcmp.lt.f32.partialorder %v329, 1.0
        %vm1310 = vcmp.lt.f32.partialorder %v330, 1.0
        %vm1311 = vcmp.lt.f32.partialorder %v331, 1.0
        %vm1312 = vcmp.lt.f32.partialorder %v332, 1.0
        %v1313 = vsel %vm1215, 1, 0
        %v1314 = vsel %vm1216, 1, 0
        %v1315 = vsel %vm1217, 1, 0
        %v1316 = vsel %vm1218, 1, 0
        %v1317 = vsel %vm1219, 1, 0
        %v1318 = vsel %vm1220, 1, 0
        %v1319 = vsel %vm1221, 1, 0
        %v1320 = vsel %vm1222, 1, 0
        %v1321 = vsel %vm1223, 1, 0
        %v1322 = vsel %vm1224, 1, 0
        %v1323 = vsel %vm1225, 1, 0
        %v1324 = vsel %vm1226, 1, 0
        %v1325 = vsel %vm1227, 1, 0
        %v1326 = vsel %vm1228, 1, 0
        %v1327 = vsel %vm1229, 1, 0
        %v1328 = vsel %vm1230, 1, 0
        %v1329 = vsel %vm1231, 1, 0
        %v1330 = vsel %vm1232, 1, 0
        %v1331 = vsel %vm1233, 1, 0
        %v1332 = vsel %vm1234, 1, 0
        %v1333 = vsel %vm1235, 1, 0
        %v1334 = vsel %vm1236, 1, 0
        %v1335 = vsel %vm1237, 1, 0
        %v1336 = vsel %vm1238, 1, 0
        %v1337 = vsel %vm1239, 1, 0
        %v1338 = vsel %vm1240, 1, 0
        %v1339 = vsel %vm1241, 1, 0
        %v1340 = vsel %vm1242, 1, 0
        %v1341 = vsel %vm1243, 1, 0
        %v1342 = vsel %vm1244, 1, 0
        %v1343 = vsel %vm1245, 1, 0
        %v1344 = vsel %vm1246, 1, 0
        %v1345 = vsel %vm1247, 1, 0
        %v1346 = vsel %vm1248, 1, 0
        %v1347 = vsel %vm1249, 1, 0
        %v1348 = vsel %vm1250, 1, 0
        %v1349 = vsel %vm1251, 1, 0
        %v1350 = vsel %vm1252, 1, 0
        %v1351 = vsel %vm1253, 1, 0
        %v1352 = vsel %vm1254, 1, 0
        %v1353 = vsel %vm1255, 1, 0
        %v1354 = vsel %vm1256, 1, 0
        %v1355 = vsel %vm1257, 1, 0
        %v1356 = vsel %vm1258, 1, 0
        %v1357 = vsel %vm1259, 1, 0
        %v1358 = vsel %vm1260, 1, 0
        %v1359 = vsel %vm1261, 1, 0
        %v1360 = vsel %vm1262, 1, 0
        %v1361 = vsel %vm1263, 1, 0
        %v1362 = vsel %vm1264, 1, 0
        %v1363 = vsel %vm1265, 1, 0
        %v1364 = vsel %vm1266, 1, 0
        %v1365 = vsel %vm1267, 1, 0
        %v1366 = vsel %vm1268, 1, 0
        %v1367 = vsel %vm1269, 1, 0
        %v1368 = vsel %vm1270, 1, 0
        %v1369 = vsel %vm1271, 1, 0
        %v1370 = vsel %vm1272, 1, 0
        %v1371 = vsel %vm1273, 1, 0
        %v1372 = vsel %vm1274, 1, 0
        %v1373 = vsel %vm1275, 1, 0
        %v1374 = vsel %vm1276, 1, 0
        %v1375 = vsel %vm1277, 1, 0
        %v1376 = vsel %vm1278, 1, 0
        %v1377 = vsel %vm1279, 1, 0
        %v1378 = vsel %vm1280, 1, 0
        %v1379 = vsel %vm1281, 1, 0
        %v1380 = vsel %vm1282, 1, 0
        %v1381 = vsel %vm1283, 1, 0
        %v1382 = vsel %vm1284, 1, 0
        %v1383 = vsel %vm1285, 1, 0
        %v1384 = vsel %vm1286, 1, 0
        %v1385 = vsel %vm1287, 1, 0
        %v1386 = vsel %vm1288, 1, 0
        %v1387 = vsel %vm1289, 1, 0
        %v1388 = vsel %vm1290, 1, 0
        %v1389 = vsel %vm1291, 1, 0
        %v1390 = vsel %vm1292, 1, 0
        %v1391 = vsel %vm1293, 1, 0
        %v1392 = vsel %vm1294, 1, 0
        %v1393 = vsel %vm1295, 1, 0
        %v1394 = vsel %vm1296, 1, 0
        %v1395 = vsel %vm1297, 1, 0
        %v1396 = vsel %vm1298, 1, 0
        %v1397 = vsel %vm1299, 1, 0
        %v1398 = vsel %vm1300, 1, 0
        %v1399 = vsel %vm1301, 1, 0
        %v1400 = vsel %vm1302, 1, 0
        %v1401 = vsel %vm1303, 1, 0
        %v1402 = vsel %vm1304, 1, 0
        %v1403 = vsel %vm1305, 1, 0
        %v1404 = vsel %vm1306, 1, 0
        %v1405 = vsel %vm1307, 1, 0
        %v1406 = vsel %vm1308, 1, 0
        %v1407 = vsel %vm1309, 1, 0
        %v1408 = vsel %vm1310, 1, 0
        %v1409 = vsel %vm1311, 1, 0
        %v1410 = vsel %vm1312, 1, 0
        %v1411 = vcvt.s32.f32 %v1313
        %v1412 = vcvt.s32.f32 %v1314
        %v1413 = vcvt.s32.f32 %v1315
        %v1414 = vcvt.s32.f32 %v1316
        %v1415 = vcvt.s32.f32 %v1317
        %v1416 = vcvt.s32.f32 %v1318
        %v1417 = vcvt.s32.f32 %v1319
        %v1418 = vcvt.s32.f32 %v1320
        %v1419 = vcvt.s32.f32 %v1321
        %v1420 = vcvt.s32.f32 %v1322
        %v1421 = vcvt.s32.f32 %v1323
        %v1422 = vcvt.s32.f32 %v1324
        %v1423 = vcvt.s32.f32 %v1325
        %v1424 = vcvt.s32.f32 %v1326
        %v1425 = vcvt.s32.f32 %v1327
        %v1426 = vcvt.s32.f32 %v1328
        %v1427 = vcvt.s32.f32 %v1329
        %v1428 = vcvt.s32.f32 %v1330
        %v1429 = vcvt.s32.f32 %v1331
        %v1430 = vcvt.s32.f32 %v1332
        %v1431 = vcvt.s32.f32 %v1333
        %v1432 = vcvt.s32.f32 %v1334
        %v1433 = vcvt.s32.f32 %v1335
        %v1434 = vcvt.s32.f32 %v1336
        %v1435 = vcvt.s32.f32 %v1337
        %v1436 = vcvt.s32.f32 %v1338
        %v1437 = vcvt.s32.f32 %v1339
        %v1438 = vcvt.s32.f32 %v1340
        %v1439 = vcvt.s32.f32 %v1341
        %v1440 = vcvt.s32.f32 %v1342
        %v1441 = vcvt.s32.f32 %v1343
        %v1442 = vcvt.s32.f32 %v1344
        %v1443 = vcvt.s32.f32 %v1345
        %v1444 = vcvt.s32.f32 %v1346
        %v1445 = vcvt.s32.f32 %v1347
        %v1446 = vcvt.s32.f32 %v1348
        %v1447 = vcvt.s32.f32 %v1349
        %v1448 = vcvt.s32.f32 %v1350
        %v1449 = vcvt.s32.f32 %v1351
        %v1450 = vcvt.s32.f32 %v1352
        %v1451 = vcvt.s32.f32 %v1353
        %v1452 = vcvt.s32.f32 %v1354
        %v1453 = vcvt.s32.f32 %v1355
        %v1454 = vcvt.s32.f32 %v1356
        %v1455 = vcvt.s32.f32 %v1357
        %v1456 = vcvt.s32.f32 %v1358
        %v1457 = vcvt.s32.f32 %v1359
        %v1458 = vcvt.s32.f32 %v1360
        %v1459 = vcvt.s32.f32 %v1361
        %v1460 = vcvt.s32.f32 %v1362
        %v1461 = vcvt.s32.f32 %v1363
        %v1462 = vcvt.s32.f32 %v1364
        %v1463 = vcvt.s32.f32 %v1365
        %v1464 = vcvt.s32.f32 %v1366
        %v1465 = vcvt.s32.f32 %v1367
        %v1466 = vcvt.s32.f32 %v1368
        %v1467 = vcvt.s32.f32 %v1369
        %v1468 = vcvt.s32.f32 %v1370
        %v1469 = vcvt.s32.f32 %v1371
        %v1470 = vcvt.s32.f32 %v1372
        %v1471 = vcvt.s32.f32 %v1373
        %v1472 = vcvt.s32.f32 %v1374
        %v1473 = vcvt.s32.f32 %v1375
        %v1474 = vcvt.s32.f32 %v1376
        %v1475 = vcvt.s32.f32 %v1377
        %v1476 = vcvt.s32.f32 %v1378
        %v1477 = vcvt.s32.f32 %v1379
        %v1478 = vcvt.s32.f32 %v1380
        %v1479 = vcvt.s32.f32 %v1381
        %v1480 = vcvt.s32.f32 %v1382
        %v1481 = vcvt.s32.f32 %v1383
        %v1482 = vcvt.s32.f32 %v1384
        %v1483 = vcvt.s32.f32 %v1385
        %v1484 = vcvt.s32.f32 %v1386
        %v1485 = vcvt.s32.f32 %v1387
        %v1486 = vcvt.s32.f32 %v1388
        %v1487 = vcvt.s32.f32 %v1389
        %v1488 = vcvt.s32.f32 %v1390
        %v1489 = vcvt.s32.f32 %v1391
        %v1490 = vcvt.s32.f32 %v1392
        %v1491 = vcvt.s32.f32 %v1393
        %v1492 = vcvt.s32.f32 %v1394
        %v1493 = vcvt.s32.f32 %v1395
        %v1494 = vcvt.s32.f32 %v1396
        %v1495 = vcvt.s32.f32 %v1397
        %v1496 = vcvt.s32.f32 %v1398
        %v1497 = vcvt.s32.f32 %v1399
        %v1498 = vcvt.s32.f32 %v1400
        %v1499 = vcvt.s32.f32 %v1401
        %v1500 = vcvt.s32.f32 %v1402
        %v1501 = vcvt.s32.f32 %v1403
        %v1502 = vcvt.s32.f32 %v1404
        %v1503 = vcvt.s32.f32 %v1405
        %v1504 = vcvt.s32.f32 %v1406
        %v1505 = vcvt.s32.f32 %v1407
        %v1506 = vcvt.s32.f32 %v1408
        %v1507 = vcvt.s32.f32 %v1409
        %v1508 = vcvt.s32.f32 %v1410
        %v1509 = vmul.f32 %v1117, %v1411
        %v1510 = vmul.f32 %v1118, %v1412
        %v1511 = vmul.f32 %v1119, %v1413
        %v1512 = vmul.f32 %v1120, %v1414
        %v1513 = vmul.f32 %v1121, %v1415
        %v1514 = vmul.f32 %v1122, %v1416
        %v1515 = vmul.f32 %v1123, %v1417
        %v1516 = vmul.f32 %v1124, %v1418
        %v1517 = vmul.f32 %v1125, %v1419
        %v1518 = vmul.f32 %v1126, %v1420
        %v1519 = vmul.f32 %v1127, %v1421
        %v1520 = vmul.f32 %v1128, %v1422
        %v1521 = vmul.f32 %v1129, %v1423
        %v1522 = vmul.f32 %v1130, %v1424
        %v1523 = vmul.f32 %v1131, %v1425
        %v1524 = vmul.f32 %v1132, %v1426
        %v1525 = vmul.f32 %v1133, %v1427
        %v1526 = vmul.f32 %v1134, %v1428
        %v1527 = vmul.f32 %v1135, %v1429
        %v1528 = vmul.f32 %v1136, %v1430
        %v1529 = vmul.f32 %v1137, %v1431
        %v1530 = vmul.f32 %v1138, %v1432
        %v1531 = vmul.f32 %v1139, %v1433
        %v1532 = vmul.f32 %v1140, %v1434
        %v1533 = vmul.f32 %v1141, %v1435
        %v1534 = vmul.f32 %v1142, %v1436
        %v1535 = vmul.f32 %v1143, %v1437
        %v1536 = vmul.f32 %v1144, %v1438
        %v1537 = vmul.f32 %v1145, %v1439
        %v1538 = vmul.f32 %v1146, %v1440
        %v1539 = vmul.f32 %v1147, %v1441
        %v1540 = vmul.f32 %v1148, %v1442
        %v1541 = vmul.f32 %v1149, %v1443
        %v1542 = vmul.f32 %v1150, %v1444
        %v1543 = vmul.f32 %v1151, %v1445
        %v1544 = vmul.f32 %v1152, %v1446
        %v1545 = vmul.f32 %v1153, %v1447
        %v1546 = vmul.f32 %v1154, %v1448
        %v1547 = vmul.f32 %v1155, %v1449
        %v1548 = vmul.f32 %v1156, %v1450
        %v1549 = vmul.f32 %v1157, %v1451
        %v1550 = vmul.f32 %v1158, %v1452
        %v1551 = vmul.f32 %v1159, %v1453
        %v1552 = vmul.f32 %v1160, %v1454
        %v1553 = vmul.f32 %v1161, %v1455
        %v1554 = vmul.f32 %v1162, %v1456
        %v1555 = vmul.f32 %v1163, %v1457
        %v1556 = vmul.f32 %v1164, %v1458
        %v1557 = vmul.f32 %v1165, %v1459
        %v1558 = vmul.f32 %v1166, %v1460
        %v1559 = vmul.f32 %v1167, %v1461
        %v1560 = vmul.f32 %v1168, %v1462
        %v1561 = vmul.f32 %v1169, %v1463
        %v1562 = vmul.f32 %v1170, %v1464
        %v1563 = vmul.f32 %v1171, %v1465
        %v1564 = vmul.f32 %v1172, %v1466
        %v1565 = vmul.f32 %v1173, %v1467
        %v1566 = vmul.f32 %v1174, %v1468
        %v1567 = vmul.f32 %v1175, %v1469
        %v1568 = vmul.f32 %v1176, %v1470
        %v1569 = vmul.f32 %v1177, %v1471
        %v1570 = vmul.f32 %v1178, %v1472
        %v1571 = vmul.f32 %v1179, %v1473
        %v1572 = vmul.f32 %v1180, %v1474
        %v1573 = vmul.f32 %v1181, %v1475
        %v1574 = vmul.f32 %v1182, %v1476
        %v1575 = vmul.f32 %v1183, %v1477
        %v1576 = vmul.f32 %v1184, %v1478
        %v1577 = vmul.f32 %v1185, %v1479
        %v1578 = vmul.f32 %v1186, %v1480
        %v1579 = vmul.f32 %v1187, %v1481
        %v1580 = vmul.f32 %v1188, %v1482
        %v1581 = vmul.f32 %v1189, %v1483
        %v1582 = vmul.f32 %v1190, %v1484
        %v1583 = vmul.f32 %v1191, %v1485
        %v1584 = vmul.f32 %v1192, %v1486
        %v1585 = vmul.f32 %v1193, %v1487
        %v1586 = vmul.f32 %v1194, %v1488
        %v1587 = vmul.f32 %v1195, %v1489
        %v1588 = vmul.f32 %v1196, %v1490
        %v1589 = vmul.f32 %v1197, %v1491
        %v1590 = vmul.f32 %v1198, %v1492
        %v1591 = vmul.f32 %v1199, %v1493
        %v1592 = vmul.f32 %v1200, %v1494
        %v1593 = vmul.f32 %v1201, %v1495
        %v1594 = vmul.f32 %v1202, %v1496
        %v1595 = vmul.f32 %v1203, %v1497
        %v1596 = vmul.f32 %v1204, %v1498
        %v1597 = vmul.f32 %v1205, %v1499
        %v1598 = vmul.f32 %v1206, %v1500
        %v1599 = vmul.f32 %v1207, %v1501
        %v1600 = vmul.f32 %v1208, %v1502
        %v1601 = vmul.f32 %v1209, %v1503
        %v1602 = vmul.f32 %v1210, %v1504
        %v1603 = vmul.f32 %v1211, %v1505
        %v1604 = vmul.f32 %v1212, %v1506
        %v1605 = vmul.f32 %v1213, %v1507
        %v1606 = vmul.f32 %v1214, %v1508
        %1607 = vst [vmem:[%s134] sm:$0xff] %v1509
        %1608 = vst [vmem:[%s134 + $0x8] sm:$0xff] %v1510
        %1609 = vst [vmem:[%s134 + $0x10] sm:$0xff] %v1511
        %1610 = vst [vmem:[%s134 + $0x18] sm:$0xff] %v1512
        %1611 = vst [vmem:[%s134 + $0x20] sm:$0xff] %v1513
        %1612 = vst [vmem:[%s134 + $0x28] sm:$0xff] %v1514
        %1613 = vst [vmem:[%s134 + $0x30] sm:$0xff] %v1515
        %1614 = vst [vmem:[%s134 + $0x38] sm:$0xff] %v1516
        %1615 = vst [vmem:[%s134 + $0x40] sm:$0xff] %v1517
        %1616 = vst [vmem:[%s134 + $0x48] sm:$0xff] %v1518
        %1617 = vst [vmem:[%s134 + $0x50] sm:$0xff] %v1519
        %1618 = vst [vmem:[%s134 + $0x58] sm:$0xff] %v1520
        %1619 = vst [vmem:[%s134 + $0x60] sm:$0xff] %v1521
        %1620 = vst [vmem:[%s134 + $0x68] sm:$0xff] %v1522
        %1621 = vst [vmem:[%s134 + $0x70] sm:$0xff] %v1523
        %1622 = vst [vmem:[%s134 + $0x78] sm:$0xff] %v1524
        %1623 = vst [vmem:[%s134 + $0x80] sm:$0xff] %v1525
        %1624 = vst [vmem:[%s134 + $0x88] sm:$0xff] %v1526
        %1625 = vst [vmem:[%s134 + $0x90] sm:$0xff] %v1527
        %1626 = vst [vmem:[%s134 + $0x98] sm:$0xff] %v1528
        %1627 = vst [vmem:[%s134 + $0xa0] sm:$0xff] %v1529
        %1628 = vst [vmem:[%s134 + $0xa8] sm:$0xff] %v1530
        %1629 = vst [vmem:[%s134 + $0xb0] sm:$0xff] %v1531
        %1630 = vst [vmem:[%s134 + $0xb8] sm:$0xff] %v1532
        %1631 = vst [vmem:[%s134 + $0xc0] sm:$0xff] %v1533
        %1632 = vst [vmem:[%s134 + $0xc8] sm:$0xff] %v1534
        %1633 = vst [vmem:[%s134 + $0xd0] sm:$0xff] %v1535
        %1634 = vst [vmem:[%s134 + $0xd8] sm:$0xff] %v1536
        %1635 = vst [vmem:[%s134 + $0xe0] sm:$0xff] %v1537
        %1636 = vst [vmem:[%s134 + $0xe8] sm:$0xff] %v1538
        %1637 = vst [vmem:[%s134 + $0xf0] sm:$0xff] %v1539
        %1638 = vst [vmem:[%s134 + $0xf8] sm:$0xff] %v1540
        %1639 = vst [vmem:[%s134 + $0x100] sm:$0xff] %v1541
        %1640 = vst [vmem:[%s134 + $0x108] sm:$0xff] %v1542
        %1641 = vst [vmem:[%s134 + $0x110] sm:$0xff] %v1543
        %1642 = vst [vmem:[%s134 + $0x118] sm:$0xff] %v1544
        %1643 = vst [vmem:[%s134 + $0x120] sm:$0xff] %v1545
        %1644 = vst [vmem:[%s134 + $0x128] sm:$0xff] %v1546
        %1645 = vst [vmem:[%s134 + $0x130] sm:$0xff] %v1547
        %1646 = vst [vmem:[%s134 + $0x138] sm:$0xff] %v1548
        %1647 = vst [vmem:[%s134 + $0x140] sm:$0xff] %v1549
        %1648 = vst [vmem:[%s134 + $0x148] sm:$0xff] %v1550
        %1649 = vst [vmem:[%s134 + $0x150] sm:$0xff] %v1551
        %1650 = vst [vmem:[%s134 + $0x158] sm:$0xff] %v1552
        %1651 = vst [vmem:[%s134 + $0x160] sm:$0xff] %v1553
        %1652 = vst [vmem:[%s134 + $0x168] sm:$0xff] %v1554
        %1653 = vst [vmem:[%s134 + $0x170] sm:$0xff] %v1555
        %1654 = vst [vmem:[%s134 + $0x178] sm:$0xff] %v1556
        %1655 = vst [vmem:[%s134 + $0x180] sm:$0xff] %v1557
        %1656 = vst [vmem:[%s134 + $0x188] sm:$0xff] %v1558
        %1657 = vst [vmem:[%s134 + $0x190] sm:$0xff] %v1559
        %1658 = vst [vmem:[%s134 + $0x198] sm:$0xff] %v1560
        %1659 = vst [vmem:[%s134 + $0x1a0] sm:$0xff] %v1561
        %1660 = vst [vmem:[%s134 + $0x1a8] sm:$0xff] %v1562
        %1661 = vst [vmem:[%s134 + $0x1b0] sm:$0xff] %v1563
        %1662 = vst [vmem:[%s134 + $0x1b8] sm:$0xff] %v1564
        %1663 = vst [vmem:[%s134 + $0x1c0] sm:$0xff] %v1565
        %1664 = vst [vmem:[%s134 + $0x1c8] sm:$0xff] %v1566
        %1665 = vst [vmem:[%s134 + $0x1d0] sm:$0xff] %v1567
        %1666 = vst [vmem:[%s134 + $0x1d8] sm:$0xff] %v1568
        %1667 = vst [vmem:[%s134 + $0x1e0] sm:$0xff] %v1569
        %1668 = vst [vmem:[%s134 + $0x1e8] sm:$0xff] %v1570
        %1669 = vst [vmem:[%s134 + $0x1f0] sm:$0xff] %v1571
        %1670 = vst [vmem:[%s134 + $0x1f8] sm:$0xff] %v1572
        %1671 = vst [vmem:[%s134 + $0x200] sm:$0xff] %v1573
        %1672 = vst [vmem:[%s134 + $0x208] sm:$0xff] %v1574
        %1673 = vst [vmem:[%s134 + $0x210] sm:$0xff] %v1575
        %1674 = vst [vmem:[%s134 + $0x218] sm:$0xff] %v1576
        %1675 = vst [vmem:[%s134 + $0x220] sm:$0xff] %v1577
        %1676 = vst [vmem:[%s134 + $0x228] sm:$0xff] %v1578
        %1677 = vst [vmem:[%s134 + $0x230] sm:$0xff] %v1579
        %1678 = vst [vmem:[%s134 + $0x238] sm:$0xff] %v1580
        %1679 = vst [vmem:[%s134 + $0x240] sm:$0xff] %v1581
        %1680 = vst [vmem:[%s134 + $0x248] sm:$0xff] %v1582
        %1681 = vst [vmem:[%s134 + $0x250] sm:$0xff] %v1583
        %1682 = vst [vmem:[%s134 + $0x258] sm:$0xff] %v1584
        %1683 = vst [vmem:[%s134 + $0x260] sm:$0xff] %v1585
        %1684 = vst [vmem:[%s134 + $0x268] sm:$0xff] %v1586
        %1685 = vst [vmem:[%s134 + $0x270] sm:$0xff] %v1587
        %1686 = vst [vmem:[%s134 + $0x278] sm:$0xff] %v1588
        %1687 = vst [vmem:[%s134 + $0x280] sm:$0xff] %v1589
        %1688 = vst [vmem:[%s134 + $0x288] sm:$0xff] %v1590
        %1689 = vst [vmem:[%s134 + $0x290] sm:$0xff] %v1591
        %1690 = vst [vmem:[%s134 + $0x298] sm:$0xff] %v1592
        %1691 = vst [vmem:[%s134 + $0x2a0] sm:$0xff] %v1593
        %1692 = vst [vmem:[%s134 + $0x2a8] sm:$0xff] %v1594
        %1693 = vst [vmem:[%s134 + $0x2b0] sm:$0xff] %v1595
        %1694 = vst [vmem:[%s134 + $0x2b8] sm:$0xff] %v1596
        %1695 = vst [vmem:[%s134 + $0x2c0] sm:$0xff] %v1597
        %1696 = vst [vmem:[%s134 + $0x2c8] sm:$0xff] %v1598
        %1697 = vst [vmem:[%s134 + $0x2d0] sm:$0xff] %v1599
        %1698 = vst [vmem:[%s134 + $0x2d8] sm:$0xff] %v1600
        %1699 = vst [vmem:[%s134 + $0x2e0] sm:$0xff] %v1601
        %1700 = vst [vmem:[%s134 + $0x2e8] sm:$0xff] %v1602
        %1701 = vst [vmem:[%s134 + $0x2f0] sm:$0xff] %v1603
        %1702 = vst [vmem:[%s134 + $0x2f8] sm:$0xff] %v1604
        %1703 = vst [vmem:[%s134 + $0x300] sm:$0xff] %v1605
        %1704 = vst [vmem:[%s134 + $0x308] sm:$0xff] %v1606
        %s1705 = sand.u32 %s52, 1
        %s1706 = scalar_lea.sflag [#allocation4], %s1705
        %s1707 = sand.u32 %s52, 1
        %s1708 = smul.addr %s1707, 784
        %s1709 = scalar_lea.vmem [#allocation5], %s1708
        // Predicated region
        $region29: #{tpu_custom_call.1} parent=23 // pred_check
          %p1710 = pneg %p62
        $region30: #{tpu_custom_call.1} parent=23 // pred_check_branch
          %1712 = sbr.rel (%p1710) target = $region32
        $region31: #{tpu_custom_call.1} parent=23 // pred_region
          %s1713 = smul.u32 98, %s18
          %s1715 = ssub.s32 12544, 12544
          %1716 = vsyncadd %s1706, %s1715
          %s1717 = smul.addr %s1713, 128
          %s1718 = scalar_lea.hbm %s1, %s1717
          %s1719 = sshll.u32 %s1709, 4
          %s1720 = int_to_ptr.vmem [resolvable:$true] %s1719
          %1725 = dma.vmem_to_hbm [thread:$0]  %s1720, 12544, %s1718, %s1706, 128, 128, 8
        $region32: #{tpu_custom_call.1} parent=23 // pred_fallthru
          _
      $region24: #{tpu_custom_call.1} parent=5 // pred_fallthru
        _
      %p1726 = scmp.le.s32.totalorder 2, %s13
      // Predicated region
      $region33: #{tpu_custom_call.1} parent=5 // pred_check
        %p1727 = pneg %p1726
      $region34: #{tpu_custom_call.1} parent=5 // pred_check_branch
        %1729 = sbr.rel (%p1727) target = $region36
      $region35: #{tpu_custom_call.1} parent=5 // pred_region
        %s1730 = ssub.s32 %s13, 2
        // Predicated region
        $region37: #{tpu_custom_call.1} parent=35 // pred_check
          %p1731 = pneg %p68
        $region38: #{tpu_custom_call.1} parent=35 // pred_check_branch
          %1733 = sbr.rel (%p1731) target = $region40
        $region39: #{tpu_custom_call.1} parent=35 // pred_region
          %s1734 = sand.u32 %s53, 1
          %s1735 = scalar_lea.sflag [#allocation4], %s1734
          %s1736 = sand.u32 %s53, 1
          %s1737 = smul.addr %s1736, 784
          %s1738 = scalar_lea.vmem [#allocation5], %s1737
          %1739 = dma.done %s1735, 12544
        $region40: #{tpu_custom_call.1} parent=35 // pred_fallthru
          _
      $region36: #{tpu_custom_call.1} parent=5 // pred_fallthru
        _
    $region6: #{tpu_custom_call.1} parent=1 // loop_footer
      %s17 = sadd.s32 1, %s13
    $region7: #{tpu_custom_call.1} parent=1 // loop_footer_branch
      %12 = sbr.rel target = $region3
    $region8: #{tpu_custom_call.1} parent=1 // loop_exit
      _
    %1740 = vsyncpa [#allocation3], 1
    %s1741 = scalar_lea.sflag [#allocation3], 1
    %1742 = vsyncpa %s1741, 1
    %1743 = vsyncpa [#allocation4], 1
    %s1744 = scalar_lea.sflag [#allocation4], 1
    %1745 = vsyncpa %s1744, 1

</llo_original>
